<compile_context>
chip_gen: v7x
topology: tpu7x:2x2x1
jax: 0.10.0
libtpu: 0.0.40
codegen_flags: <defaults>
</compile_context>

<pallas_src>
import math
import functools

import jax
import jax.numpy as jnp
from jax import lax
from jax.experimental import pallas as pl
from jax.experimental.pallas import tpu as pltpu

F32 = jnp.float32
LN_EPS = 1e-5

HIDDEN = 32        # hidden_size
NUM_HEADS = 2      # nheads
MAX_POS = 16       # max_position_embeddings


def _layer_norm(x, g, b):
    mu = jnp.mean(x, axis=-1, keepdims=True)
    var = jnp.mean((x - mu) ** 2, axis=-1, keepdims=True)
    return (x - mu) * lax.rsqrt(var + LN_EPS) * g + b


def _text_encoder_kernel(feat_ref, mask_row_ref, mask_col_ref, pos_ref, ln_ref,
                         wqkv_ref, bqkv_ref, wo_ref, bo_ref, wmap_ref, out_ref,
                         *, num_heads):
    # One grid step == one batch row; everything stays in VMEM / vregs.
    feat = feat_ref[...]              # (L, D)
    mask_row = mask_row_ref[...]      # (1, L)  1 = valid
    mask_col = mask_col_ref[...]      # (L, 1)
    l, d = feat.shape
    hd = d // num_heads
    scale = 1.0 / math.sqrt(hd)

    # --- TrainablePositionalEncoding: LN(feat + pos_emb)  (dropout = identity) ---
    x = _layer_norm(feat + pos_ref[...], ln_ref[0:1, :], ln_ref[1:2, :])

    # --- BertSelfAttention: fused QKV projection ---
    qkv = jnp.dot(x, wqkv_ref[...], preferred_element_type=F32) + bqkv_ref[...]
    key_bias = (1.0 - mask_row) * (-10000.0)          # additive key-padding bias

    # Per-head attention; output projection accumulated per head so head
    # contexts are never concatenated along the lane axis.
    attn_out = jnp.zeros((l, d), F32)
    for h in range(num_heads):
        lo = h * hd
        q_h = qkv[:, lo:lo + hd] * scale
        k_h = qkv[:, d + lo:d + lo + hd]
        v_h = qkv[:, 2 * d + lo:2 * d + lo + hd]
        s = lax.dot_general(q_h, k_h, (((1,), (1,)), ((), ())),
                            preferred_element_type=F32)        # (L, L)
        s = s + key_bias
        s = s - jnp.max(s, axis=-1, keepdims=True)
        e = jnp.exp(s)
        p = e * pl.reciprocal(jnp.sum(e, axis=-1, keepdims=True), approx=True)
        ctx_h = jnp.dot(p, v_h, preferred_element_type=F32)    # (L, hd)
        attn_out = attn_out + jnp.dot(ctx_h, wo_ref[lo:lo + hd, :],
                                      preferred_element_type=F32)

    # --- BertSelfOutput: LN(dense(ctx) + residual)  (dropout = identity) ---
    h2 = _layer_norm(attn_out + bo_ref[...] + x, ln_ref[2:3, :], ln_ref[3:4, :])

    # --- modular_vector_mapping + mask_logits + softmax over L + pooling ---
    scores = jnp.sum(h2 * wmap_ref[...], axis=-1, keepdims=True)    # (L, 1)
    scores = scores * mask_col + (1.0 - mask_col) * (-1e10)         # mask_logits
    scores = scores - jnp.max(scores, axis=0, keepdims=True)
    e2 = jnp.exp(scores)
    w = e2 * pl.reciprocal(jnp.sum(e2, axis=0, keepdims=True), approx=True)
    out_ref[...] = jnp.sum(w * h2, axis=0, keepdims=True)           # (1, D)


@jax.jit
def text_encoder_forward(params, feat, mask):
    B, L, D = feat.shape
    pos = params['pos_emb'][:L]                     # (L, D)
    mask = mask.astype(F32)
    mask_row = mask.reshape(B, 1, L)
    mask_col = mask.reshape(B, L, 1)

    kernel = functools.partial(_text_encoder_kernel, num_heads=NUM_HEADS)
    pooled = pl.pallas_call(
        kernel,
        out_shape=jax.ShapeDtypeStruct((B, 1, D), F32),
        grid=(B,),
        in_specs=[
            pl.BlockSpec((None, L, D), lambda b: (b, 0, 0)),   # feat
            pl.BlockSpec((None, 1, L), lambda b: (b, 0, 0)),   # mask (row layout)
            pl.BlockSpec((None, L, 1), lambda b: (b, 0, 0)),   # mask (col layout)
            pl.BlockSpec((L, D), lambda b: (0, 0)),            # pos embedding rows
            pl.BlockSpec((4, D), lambda b: (0, 0)),            # packed LN params
            pl.BlockSpec((D, 3 * D), lambda b: (0, 0)),        # fused Wqkv
            pl.BlockSpec((1, 3 * D), lambda b: (0, 0)),        # fused bqkv
            pl.BlockSpec((D, D), lambda b: (0, 0)),            # Wo
            pl.BlockSpec((1, D), lambda b: (0, 0)),            # bo
            pl.BlockSpec((1, D), lambda b: (0, 0)),            # modular_vector_mapping
        ],
        out_specs=pl.BlockSpec((None, 1, D), lambda b: (b, 0, 0)),
        compiler_params=pltpu.CompilerParams(
            dimension_semantics=("parallel",)),
    )(feat.astype(F32), mask_row, mask_col, pos, params['ln'],
      params['wqkv'], params['bqkv'], params['wo'], params['bo'], params['wmap'])
    return pooled.reshape(B, D)


# ----------------------------- pure-JAX reference ----------------------------

def text_encoder_ref(params, feat, mask):
    B, L, D = feat.shape
    hp = lax.Precision.HIGHEST
    pos = params['pos_emb'][:L]
    g1, b1, g2, b2 = (params['ln'][0], params['ln'][1],
                      params['ln'][2], params['ln'][3])

    def ln(x, g, b):
        mu = jnp.mean(x, -1, keepdims=True)
        var = jnp.mean((x - mu) ** 2, -1, keepdims=True)
        return (x - mu) / jnp.sqrt(var + LN_EPS) * g + b

    x = ln(feat + pos[None], g1, b1)
    qkv = jnp.einsum('bld,de->ble', x, params['wqkv'], precision=hp) + params['bqkv'][0]
    q, k, v = qkv[..., :D], qkv[..., D:2 * D], qkv[..., 2 * D:]
    hd = D // NUM_HEADS
    qh = q.reshape(B, L, NUM_HEADS, hd)
    kh = k.reshape(B, L, NUM_HEADS, hd)
    vh = v.reshape(B, L, NUM_HEADS, hd)
    s = jnp.einsum('bqhd,bkhd->bhqk', qh, kh, precision=hp) / math.sqrt(hd)
    s = s + ((1.0 - mask) * (-10000.0))[:, None, None, :]
    p = jax.nn.softmax(s, axis=-1)
    ctx = jnp.einsum('bhqk,bkhd->bqhd', p, vh, precision=hp).reshape(B, L, D)
    attn_out = jnp.einsum('bld,de->ble', ctx, params['wo'], precision=hp) + params['bo'][0]
    h2 = ln(attn_out + x, g2, b2)
    scores = jnp.einsum('bld,d->bl', h2, params['wmap'][0], precision=hp)[..., None]
    m = mask[..., None]
    scores = scores * m + (1.0 - m) * (-1e10)
    w = jax.nn.softmax(scores, axis=1)
    return jnp.einsum('blm,bld->bmd', w, h2, precision=hp)[:, 0]


# --------------------------------- params ------------------------------------

def init_params(key):
    ks = jax.random.split(key, 6)
    s = 0.2
    return dict(
        pos_emb=jax.random.normal(ks[0], (MAX_POS, HIDDEN), F32) * s,
        # packed LayerNorm params: rows = [pe_gamma, pe_beta, out_gamma, out_beta]
        ln=jnp.stack([jnp.ones((HIDDEN,), F32), jnp.zeros((HIDDEN,), F32),
                      jnp.ones((HIDDEN,), F32), jnp.zeros((HIDDEN,), F32)], axis=0),
        wqkv=jax.random.normal(ks[1], (HIDDEN, 3 * HIDDEN), F32) * s,
        bqkv=jax.random.normal(ks[2], (1, 3 * HIDDEN), F32) * s,
        wo=jax.random.normal(ks[3], (HIDDEN, HIDDEN), F32) * s,
        bo=jax.random.normal(ks[4], (1, HIDDEN), F32) * s,
        wmap=jax.random.normal(ks[5], (1, HIDDEN), F32) * s,   # Linear(D, 1, bias=False)
    )


if __name__ == "__main__":
    # TODO(synk): nn.Dropout layers (input_drop, attention/hidden drop) run in
    # eval mode and are therefore identities here.
    key = jax.random.PRNGKey(0)
    params = init_params(jax.random.fold_in(key, 1))

    B, L = 2, 8
    feat = jax.random.normal(jax.random.fold_in(key, 2), (B, L, HIDDEN), F32)
    mask = jnp.ones((B, L), F32).at[1, -3:].set(0.0)   # 1 = valid

    out = jax.block_until_ready(text_encoder_forward(params, feat, mask))
    ref = text_encoder_ref(params, feat, mask)

    assert out.shape == (B, HIDDEN)
    assert bool(jnp.all(jnp.isfinite(out)))
    assert bool(jnp.allclose(out, ref, atol=2e-2, rtol=2e-2)), \
        float(jnp.max(jnp.abs(out - ref)))
    print("KERNEL_OK")
</pallas_src>

<mosaic_0001>
module attributes {stable_mosaic.version = 11 : i64} {
  func.func @_text_encoder_kernel(%arg0: i32, %arg1: memref<1x8x32xf32, #tpu.memory_space<vmem>>, %arg2: memref<1x1x8xf32, #tpu.memory_space<vmem>>, %arg3: memref<1x8x1xf32, #tpu.memory_space<vmem>>, %arg4: memref<8x32xf32, #tpu.memory_space<vmem>>, %arg5: memref<4x32xf32, #tpu.memory_space<vmem>>, %arg6: memref<32x96xf32, #tpu.memory_space<vmem>>, %arg7: memref<1x96xf32, #tpu.memory_space<vmem>>, %arg8: memref<32x32xf32, #tpu.memory_space<vmem>>, %arg9: memref<1x32xf32, #tpu.memory_space<vmem>>, %arg10: memref<1x32xf32, #tpu.memory_space<vmem>>, %arg11: memref<1x1x32xf32, #tpu.memory_space<vmem>>) attributes {dimension_semantics = [#tpu.dimension_semantics<parallel>], iteration_bounds = array<i64: 2>, scalar_prefetch = 0 : i64, scratch_operands = 0 : i64, tpu.core_type = #tpu.core_type<tc>, window_params = [{transform_indices = @transform_0, window_bounds = array<i64: 1, 8, 32>}, {transform_indices = @transform_1, window_bounds = array<i64: 1, 1, 8>}, {transform_indices = @transform_2, window_bounds = array<i64: 1, 8, 1>}, {pipeline_mode = #tpu.pipeline_mode<synchronous>, transform_indices = @transform_3, window_bounds = array<i64: 8, 32>}, {pipeline_mode = #tpu.pipeline_mode<synchronous>, transform_indices = @transform_4, window_bounds = array<i64: 4, 32>}, {pipeline_mode = #tpu.pipeline_mode<synchronous>, transform_indices = @transform_5, window_bounds = array<i64: 32, 96>}, {pipeline_mode = #tpu.pipeline_mode<synchronous>, transform_indices = @transform_6, window_bounds = array<i64: 1, 96>}, {pipeline_mode = #tpu.pipeline_mode<synchronous>, transform_indices = @transform_7, window_bounds = array<i64: 32, 32>}, {pipeline_mode = #tpu.pipeline_mode<synchronous>, transform_indices = @transform_8, window_bounds = array<i64: 1, 32>}, {pipeline_mode = #tpu.pipeline_mode<synchronous>, transform_indices = @transform_9, window_bounds = array<i64: 1, 32>}, {transform_indices = @transform_10, window_bounds = array<i64: 1, 1, 32>}]} {
    %c0 = arith.constant 0 : index
    %c0_0 = arith.constant 0 : index
    %c0_1 = arith.constant 0 : index
    %0 = vector.load %arg1[%c0, %c0_0, %c0_1] : memref<1x8x32xf32, #tpu.memory_space<vmem>>, vector<1x8x32xf32>
    %1 = vector.shape_cast %0 : vector<1x8x32xf32> to vector<8x32xf32>
    %c0_2 = arith.constant 0 : index
    %c0_3 = arith.constant 0 : index
    %c0_4 = arith.constant 0 : index
    %2 = vector.load %arg2[%c0_2, %c0_3, %c0_4] : memref<1x1x8xf32, #tpu.memory_space<vmem>>, vector<1x1x8xf32>
    %3 = vector.shape_cast %2 : vector<1x1x8xf32> to vector<1x8xf32>
    %c0_5 = arith.constant 0 : index
    %c0_6 = arith.constant 0 : index
    %c0_7 = arith.constant 0 : index
    %4 = vector.load %arg3[%c0_5, %c0_6, %c0_7] : memref<1x8x1xf32, #tpu.memory_space<vmem>>, vector<1x8x1xf32>
    %5 = vector.shape_cast %4 : vector<1x8x1xf32> to vector<8x1xf32>
    %c0_8 = arith.constant 0 : index
    %c0_9 = arith.constant 0 : index
    %6 = vector.load %arg4[%c0_8, %c0_9] : memref<8x32xf32, #tpu.memory_space<vmem>>, vector<8x32xf32>
    %7 = arith.addf %1, %6 : vector<8x32xf32>
    %c0_10 = arith.constant 0 : index
    %c0_11 = arith.constant 0 : index
    %8 = vector.load %arg5[%c0_10, %c0_11] : memref<4x32xf32, #tpu.memory_space<vmem>>, vector<1x32xf32>
    %c1 = arith.constant 1 : index
    %c0_12 = arith.constant 0 : index
    %9 = vector.load %arg5[%c1, %c0_12] : memref<4x32xf32, #tpu.memory_space<vmem>>, vector<1x32xf32>
    %cst = arith.constant dense<0.000000e+00> : vector<8xf32>
    %10 = vector.multi_reduction <add>, %7, %cst [1] : vector<8x32xf32> to vector<8xf32>
    %11 = vector.shape_cast %10 : vector<8xf32> to vector<8x1xf32>
    %cst_13 = arith.constant 3.200000e+01 : f32
    %12 = vector.broadcast %cst_13 : f32 to vector<8x1xf32>
    %13 = arith.divf %11, %12 : vector<8x1xf32>
    %14 = vector.broadcast %13 : vector<8x1xf32> to vector<8x32xf32>
    %15 = arith.subf %7, %14 : vector<8x32xf32>
    %16 = arith.mulf %15, %15 : vector<8x32xf32>
    %cst_14 = arith.constant dense<0.000000e+00> : vector<8xf32>
    %17 = vector.multi_reduction <add>, %16, %cst_14 [1] : vector<8x32xf32> to vector<8xf32>
    %18 = vector.shape_cast %17 : vector<8xf32> to vector<8x1xf32>
    %cst_15 = arith.constant 3.200000e+01 : f32
    %19 = vector.broadcast %cst_15 : f32 to vector<8x1xf32>
    %20 = arith.divf %18, %19 : vector<8x1xf32>
    %21 = vector.broadcast %13 : vector<8x1xf32> to vector<8x32xf32>
    %22 = arith.subf %7, %21 : vector<8x32xf32>
    %cst_16 = arith.constant 9.99999974E-6 : f32
    %23 = vector.broadcast %cst_16 : f32 to vector<8x1xf32>
    %24 = arith.addf %20, %23 : vector<8x1xf32>
    %25 = math.rsqrt %24 : vector<8x1xf32>
    %26 = vector.broadcast %25 : vector<8x1xf32> to vector<8x32xf32>
    %27 = arith.mulf %22, %26 : vector<8x32xf32>
    %28 = vector.broadcast %8 : vector<1x32xf32> to vector<8x32xf32>
    %29 = arith.mulf %27, %28 : vector<8x32xf32>
    %30 = vector.broadcast %9 : vector<1x32xf32> to vector<8x32xf32>
    %31 = arith.addf %29, %30 : vector<8x32xf32>
    %c0_17 = arith.constant 0 : index
    %c0_18 = arith.constant 0 : index
    %32 = vector.load %arg6[%c0_17, %c0_18] : memref<32x96xf32, #tpu.memory_space<vmem>>, vector<32x96xf32>
    %cst_19 = arith.constant dense<0.000000e+00> : vector<8x96xf32>
    %33 = tpu.matmul %31, %32, %cst_19 {dimension_numbers = #tpu.dot_dimension_numbers<[1], [0], [0], [1], [0, 0, 1, 1], [], []>} : vector<8x32xf32>, vector<32x96xf32>, vector<8x96xf32> -> vector<8x96xf32>
    %c0_20 = arith.constant 0 : index
    %c0_21 = arith.constant 0 : index
    %34 = vector.load %arg7[%c0_20, %c0_21] : memref<1x96xf32, #tpu.memory_space<vmem>>, vector<1x96xf32>
    %35 = vector.broadcast %34 : vector<1x96xf32> to vector<8x96xf32>
    %36 = arith.addf %33, %35 : vector<8x96xf32>
    %cst_22 = arith.constant 1.000000e+00 : f32
    %37 = vector.broadcast %cst_22 : f32 to vector<1x8xf32>
    %38 = arith.subf %37, %3 : vector<1x8xf32>
    %cst_23 = arith.constant -1.000000e+04 : f32
    %39 = vector.broadcast %cst_23 : f32 to vector<1x8xf32>
    %40 = arith.mulf %38, %39 : vector<1x8xf32>
    %cst_24 = arith.constant 0.000000e+00 : f32
    %41 = vector.broadcast %cst_24 : f32 to vector<8x32xf32>
    %42 = vector.extract_strided_slice %36 {offsets = [0, 0], sizes = [8, 16], strides = [1, 1]} : vector<8x96xf32> to vector<8x16xf32>
    %cst_25 = arith.constant 2.500000e-01 : f32
    %43 = vector.broadcast %cst_25 : f32 to vector<8x16xf32>
    %44 = arith.mulf %42, %43 : vector<8x16xf32>
    %45 = vector.extract_strided_slice %36 {offsets = [0, 32], sizes = [8, 16], strides = [1, 1]} : vector<8x96xf32> to vector<8x16xf32>
    %46 = vector.extract_strided_slice %36 {offsets = [0, 64], sizes = [8, 16], strides = [1, 1]} : vector<8x96xf32> to vector<8x16xf32>
    %cst_26 = arith.constant dense<0.000000e+00> : vector<8x8xf32>
    %47 = tpu.matmul %44, %45, %cst_26 {dimension_numbers = #tpu.dot_dimension_numbers<[1], [1], [0], [0], [0, 0, 1, 0], [], []>} : vector<8x16xf32>, vector<8x16xf32>, vector<8x8xf32> -> vector<8x8xf32>
    %48 = vector.broadcast %40 : vector<1x8xf32> to vector<8x8xf32>
    %49 = arith.addf %47, %48 : vector<8x8xf32>
    %cst_27 = arith.constant dense<0xFF800000> : vector<8xf32>
    %50 = vector.multi_reduction <maximumf>, %49, %cst_27 [1] : vector<8x8xf32> to vector<8xf32>
    %51 = vector.shape_cast %50 : vector<8xf32> to vector<8x1xf32>
    %52 = vector.broadcast %51 : vector<8x1xf32> to vector<8x8xf32>
    %53 = arith.subf %49, %52 : vector<8x8xf32>
    %54 = math.exp %53 : vector<8x8xf32>
    %cst_28 = arith.constant dense<0.000000e+00> : vector<8xf32>
    %55 = vector.multi_reduction <add>, %54, %cst_28 [1] : vector<8x8xf32> to vector<8xf32>
    %56 = vector.shape_cast %55 : vector<8xf32> to vector<8x1xf32>
    %57 = tpu.reciprocal %56 {approx = true} : vector<8x1xf32> -> vector<8x1xf32>
    %58 = vector.broadcast %57 : vector<8x1xf32> to vector<8x8xf32>
    %59 = arith.mulf %54, %58 : vector<8x8xf32>
    %cst_29 = arith.constant dense<0.000000e+00> : vector<8x16xf32>
    %60 = tpu.matmul %59, %46, %cst_29 {dimension_numbers = #tpu.dot_dimension_numbers<[1], [0], [0], [1], [0, 0, 1, 1], [], []>} : vector<8x8xf32>, vector<8x16xf32>, vector<8x16xf32> -> vector<8x16xf32>
    %c0_30 = arith.constant 0 : index
    %c0_31 = arith.constant 0 : index
    %61 = vector.load %arg8[%c0_30, %c0_31] : memref<32x32xf32, #tpu.memory_space<vmem>>, vector<16x32xf32>
    %cst_32 = arith.constant dense<0.000000e+00> : vector<8x32xf32>
    %62 = tpu.matmul %60, %61, %cst_32 {dimension_numbers = #tpu.dot_dimension_numbers<[1], [0], [0], [1], [0, 0, 1, 1], [], []>} : vector<8x16xf32>, vector<16x32xf32>, vector<8x32xf32> -> vector<8x32xf32>
    %63 = arith.addf %41, %62 : vector<8x32xf32>
    %64 = vector.extract_strided_slice %36 {offsets = [0, 16], sizes = [8, 16], strides = [1, 1]} : vector<8x96xf32> to vector<8x16xf32>
    %cst_33 = arith.constant 2.500000e-01 : f32
    %65 = vector.broadcast %cst_33 : f32 to vector<8x16xf32>
    %66 = arith.mulf %64, %65 : vector<8x16xf32>
    %67 = vector.extract_strided_slice %36 {offsets = [0, 48], sizes = [8, 16], strides = [1, 1]} : vector<8x96xf32> to vector<8x16xf32>
    %68 = vector.extract_strided_slice %36 {offsets = [0, 80], sizes = [8, 16], strides = [1, 1]} : vector<8x96xf32> to vector<8x16xf32>
    %cst_34 = arith.constant dense<0.000000e+00> : vector<8x8xf32>
    %69 = tpu.matmul %66, %67, %cst_34 {dimension_numbers = #tpu.dot_dimension_numbers<[1], [1], [0], [0], [0, 0, 1, 0], [], []>} : vector<8x16xf32>, vector<8x16xf32>, vector<8x8xf32> -> vector<8x8xf32>
    %70 = vector.broadcast %40 : vector<1x8xf32> to vector<8x8xf32>
    %71 = arith.addf %69, %70 : vector<8x8xf32>
    %cst_35 = arith.constant dense<0xFF800000> : vector<8xf32>
    %72 = vector.multi_reduction <maximumf>, %71, %cst_35 [1] : vector<8x8xf32> to vector<8xf32>
    %73 = vector.shape_cast %72 : vector<8xf32> to vector<8x1xf32>
    %74 = vector.broadcast %73 : vector<8x1xf32> to vector<8x8xf32>
    %75 = arith.subf %71, %74 : vector<8x8xf32>
    %76 = math.exp %75 : vector<8x8xf32>
    %cst_36 = arith.constant dense<0.000000e+00> : vector<8xf32>
    %77 = vector.multi_reduction <add>, %76, %cst_36 [1] : vector<8x8xf32> to vector<8xf32>
    %78 = vector.shape_cast %77 : vector<8xf32> to vector<8x1xf32>
    %79 = tpu.reciprocal %78 {approx = true} : vector<8x1xf32> -> vector<8x1xf32>
    %80 = vector.broadcast %79 : vector<8x1xf32> to vector<8x8xf32>
    %81 = arith.mulf %76, %80 : vector<8x8xf32>
    %cst_37 = arith.constant dense<0.000000e+00> : vector<8x16xf32>
    %82 = tpu.matmul %81, %68, %cst_37 {dimension_numbers = #tpu.dot_dimension_numbers<[1], [0], [0], [1], [0, 0, 1, 1], [], []>} : vector<8x8xf32>, vector<8x16xf32>, vector<8x16xf32> -> vector<8x16xf32>
    %c16 = arith.constant 16 : index
    %c0_38 = arith.constant 0 : index
    %83 = vector.load %arg8[%c16, %c0_38] : memref<32x32xf32, #tpu.memory_space<vmem>>, vector<16x32xf32>
    %cst_39 = arith.constant dense<0.000000e+00> : vector<8x32xf32>
    %84 = tpu.matmul %82, %83, %cst_39 {dimension_numbers = #tpu.dot_dimension_numbers<[1], [0], [0], [1], [0, 0, 1, 1], [], []>} : vector<8x16xf32>, vector<16x32xf32>, vector<8x32xf32> -> vector<8x32xf32>
    %85 = arith.addf %63, %84 : vector<8x32xf32>
    %c0_40 = arith.constant 0 : index
    %c0_41 = arith.constant 0 : index
    %86 = vector.load %arg9[%c0_40, %c0_41] : memref<1x32xf32, #tpu.memory_space<vmem>>, vector<1x32xf32>
    %87 = vector.broadcast %86 : vector<1x32xf32> to vector<8x32xf32>
    %88 = arith.addf %85, %87 : vector<8x32xf32>
    %89 = arith.addf %88, %31 : vector<8x32xf32>
    %c2 = arith.constant 2 : index
    %c0_42 = arith.constant 0 : index
    %90 = vector.load %arg5[%c2, %c0_42] : memref<4x32xf32, #tpu.memory_space<vmem>>, vector<1x32xf32>
    %c3 = arith.constant 3 : index
    %c0_43 = arith.constant 0 : index
    %91 = vector.load %arg5[%c3, %c0_43] : memref<4x32xf32, #tpu.memory_space<vmem>>, vector<1x32xf32>
    %cst_44 = arith.constant dense<0.000000e+00> : vector<8xf32>
    %92 = vector.multi_reduction <add>, %89, %cst_44 [1] : vector<8x32xf32> to vector<8xf32>
    %93 = vector.shape_cast %92 : vector<8xf32> to vector<8x1xf32>
    %cst_45 = arith.constant 3.200000e+01 : f32
    %94 = vector.broadcast %cst_45 : f32 to vector<8x1xf32>
    %95 = arith.divf %93, %94 : vector<8x1xf32>
    %96 = vector.broadcast %95 : vector<8x1xf32> to vector<8x32xf32>
    %97 = arith.subf %89, %96 : vector<8x32xf32>
    %98 = arith.mulf %97, %97 : vector<8x32xf32>
    %cst_46 = arith.constant dense<0.000000e+00> : vector<8xf32>
    %99 = vector.multi_reduction <add>, %98, %cst_46 [1] : vector<8x32xf32> to vector<8xf32>
    %100 = vector.shape_cast %99 : vector<8xf32> to vector<8x1xf32>
    %cst_47 = arith.constant 3.200000e+01 : f32
    %101 = vector.broadcast %cst_47 : f32 to vector<8x1xf32>
    %102 = arith.divf %100, %101 : vector<8x1xf32>
    %103 = vector.broadcast %95 : vector<8x1xf32> to vector<8x32xf32>
    %104 = arith.subf %89, %103 : vector<8x32xf32>
    %cst_48 = arith.constant 9.99999974E-6 : f32
    %105 = vector.broadcast %cst_48 : f32 to vector<8x1xf32>
    %106 = arith.addf %102, %105 : vector<8x1xf32>
    %107 = math.rsqrt %106 : vector<8x1xf32>
    %108 = vector.broadcast %107 : vector<8x1xf32> to vector<8x32xf32>
    %109 = arith.mulf %104, %108 : vector<8x32xf32>
    %110 = vector.broadcast %90 : vector<1x32xf32> to vector<8x32xf32>
    %111 = arith.mulf %109, %110 : vector<8x32xf32>
    %112 = vector.broadcast %91 : vector<1x32xf32> to vector<8x32xf32>
    %113 = arith.addf %111, %112 : vector<8x32xf32>
    %c0_49 = arith.constant 0 : index
    %c0_50 = arith.constant 0 : index
    %114 = vector.load %arg10[%c0_49, %c0_50] : memref<1x32xf32, #tpu.memory_space<vmem>>, vector<1x32xf32>
    %115 = vector.broadcast %114 : vector<1x32xf32> to vector<8x32xf32>
    %116 = arith.mulf %113, %115 : vector<8x32xf32>
    %cst_51 = arith.constant dense<0.000000e+00> : vector<8xf32>
    %117 = vector.multi_reduction <add>, %116, %cst_51 [1] : vector<8x32xf32> to vector<8xf32>
    %118 = vector.shape_cast %117 : vector<8xf32> to vector<8x1xf32>
    %119 = arith.mulf %118, %5 : vector<8x1xf32>
    %cst_52 = arith.constant 1.000000e+00 : f32
    %120 = vector.broadcast %cst_52 : f32 to vector<8x1xf32>
    %121 = arith.subf %120, %5 : vector<8x1xf32>
    %cst_53 = arith.constant -1.000000e+10 : f32
    %122 = vector.broadcast %cst_53 : f32 to vector<8x1xf32>
    %123 = arith.mulf %121, %122 : vector<8x1xf32>
    %124 = arith.addf %119, %123 : vector<8x1xf32>
    %cst_54 = arith.constant dense<0xFF800000> : vector<1xf32>
    %125 = vector.multi_reduction <maximumf>, %124, %cst_54 [0] : vector<8x1xf32> to vector<1xf32>
    %126 = vector.shape_cast %125 : vector<1xf32> to vector<1x1xf32>
    %127 = vector.broadcast %126 : vector<1x1xf32> to vector<8x1xf32>
    %128 = arith.subf %124, %127 : vector<8x1xf32>
    %129 = math.exp %128 : vector<8x1xf32>
    %cst_55 = arith.constant dense<0.000000e+00> : vector<1xf32>
    %130 = vector.multi_reduction <add>, %129, %cst_55 [0] : vector<8x1xf32> to vector<1xf32>
    %131 = vector.shape_cast %130 : vector<1xf32> to vector<1x1xf32>
    %132 = tpu.reciprocal %131 {approx = true} : vector<1x1xf32> -> vector<1x1xf32>
    %133 = vector.broadcast %132 : vector<1x1xf32> to vector<8x1xf32>
    %134 = arith.mulf %129, %133 : vector<8x1xf32>
    %135 = vector.broadcast %134 : vector<8x1xf32> to vector<8x32xf32>
    %136 = arith.mulf %135, %113 : vector<8x32xf32>
    %cst_56 = arith.constant dense<0.000000e+00> : vector<32xf32>
    %137 = vector.multi_reduction <add>, %136, %cst_56 [0] : vector<8x32xf32> to vector<32xf32>
    %138 = vector.shape_cast %137 : vector<32xf32> to vector<1x32xf32>
    %c0_57 = arith.constant 0 : index
    %c0_58 = arith.constant 0 : index
    %c0_59 = arith.constant 0 : index
    %139 = vector.load %arg11[%c0_57, %c0_58, %c0_59] : memref<1x1x32xf32, #tpu.memory_space<vmem>>, vector<1x1x32xf32>
    %140 = vector.shape_cast %139 : vector<1x1x32xf32> to vector<1x32xf32>
    %141 = vector.shape_cast %138 : vector<1x32xf32> to vector<1x1x32xf32>
    tpu.vector_store %arg11[%c0_57, %c0_58, %c0_59], %141 {strides = array<i32>} : memref<1x1x32xf32, #tpu.memory_space<vmem>>, vector<1x1x32xf32>,
    return
  }
  func.func @transform_0(%arg0: i32) -> (i32, i32, i32) {
    %c0_i32 = arith.constant 0 : i32
    %c0_i32_0 = arith.constant 0 : i32
    %c0_i32_1 = arith.constant 0 : i32
    return %arg0, %c0_i32, %c0_i32_0 : i32, i32, i32
  }
  func.func @transform_1(%arg0: i32) -> (i32, i32, i32) {
    %c0_i32 = arith.constant 0 : i32
    %c0_i32_0 = arith.constant 0 : i32
    %c0_i32_1 = arith.constant 0 : i32
    return %arg0, %c0_i32, %c0_i32_0 : i32, i32, i32
  }
  func.func @transform_2(%arg0: i32) -> (i32, i32, i32) {
    %c0_i32 = arith.constant 0 : i32
    %c0_i32_0 = arith.constant 0 : i32
    %c0_i32_1 = arith.constant 0 : i32
    return %arg0, %c0_i32, %c0_i32_0 : i32, i32, i32
  }
  func.func @transform_3(%arg0: i32) -> (i32, i32) {
    %c0_i32 = arith.constant 0 : i32
    %c0_i32_0 = arith.constant 0 : i32
    %c0_i32_1 = arith.constant 0 : i32
    return %c0_i32, %c0_i32_0 : i32, i32
  }
  func.func @transform_4(%arg0: i32) -> (i32, i32) {
    %c0_i32 = arith.constant 0 : i32
    %c0_i32_0 = arith.constant 0 : i32
    %c0_i32_1 = arith.constant 0 : i32
    return %c0_i32, %c0_i32_0 : i32, i32
  }
  func.func @transform_5(%arg0: i32) -> (i32, i32) {
    %c0_i32 = arith.constant 0 : i32
    %c0_i32_0 = arith.constant 0 : i32
    %c0_i32_1 = arith.constant 0 : i32
    return %c0_i32, %c0_i32_0 : i32, i32
  }
  func.func @transform_6(%arg0: i32) -> (i32, i32) {
    %c0_i32 = arith.constant 0 : i32
    %c0_i32_0 = arith.constant 0 : i32
    %c0_i32_1 = arith.constant 0 : i32
    return %c0_i32, %c0_i32_0 : i32, i32
  }
  func.func @transform_7(%arg0: i32) -> (i32, i32) {
    %c0_i32 = arith.constant 0 : i32
    %c0_i32_0 = arith.constant 0 : i32
    %c0_i32_1 = arith.constant 0 : i32
    return %c0_i32, %c0_i32_0 : i32, i32
  }
  func.func @transform_8(%arg0: i32) -> (i32, i32) {
    %c0_i32 = arith.constant 0 : i32
    %c0_i32_0 = arith.constant 0 : i32
    %c0_i32_1 = arith.constant 0 : i32
    return %c0_i32, %c0_i32_0 : i32, i32
  }
  func.func @transform_9(%arg0: i32) -> (i32, i32) {
    %c0_i32 = arith.constant 0 : i32
    %c0_i32_0 = arith.constant 0 : i32
    %c0_i32_1 = arith.constant 0 : i32
    return %c0_i32, %c0_i32_0 : i32, i32
  }
  func.func @transform_10(%arg0: i32) -> (i32, i32, i32) {
    %c0_i32 = arith.constant 0 : i32
    %c0_i32_0 = arith.constant 0 : i32
    %c0_i32_1 = arith.constant 0 : i32
    return %arg0, %c0_i32, %c0_i32_0 : i32, i32, i32
  }
}

</mosaic_0001>

<llo_original>
// kernel: text_encoder_forward.1
$region0: #{text_encoder_forward.1}
  #allocation0 [shape = 'u32[]', space=smem, size = 0x4, offset = 0x4, fixed_abs, tag = 'smem constant byte address 0x4 - core index']
  #allocation1 [shape = 'u32[144,128]{1,0:T(1,128)}', space=vmem, size = 0x12000, scoped, tag = 'internal scratch']
  %s0 = inlined_call_operand.vmem [shape: f32[2,8,32], index: 0, kind: input, shape index: {}]
  %s1 = inlined_call_operand.vmem [shape: f32[2,1,8], index: 1, kind: input, shape index: {}]
  %s2 = inlined_call_operand.vmem [shape: f32[2,8,1], index: 2, kind: input, shape index: {}]
  %s3 = inlined_call_operand.vmem [shape: f32[8,32], index: 3, kind: input, shape index: {}]
  %s4 = inlined_call_operand.vmem [shape: f32[4,32], index: 4, kind: input, shape index: {}]
  %s5 = inlined_call_operand.vmem [shape: f32[32,96], index: 5, kind: input, shape index: {}]
  %s6 = inlined_call_operand.vmem [shape: f32[1,96], index: 6, kind: input, shape index: {}]
  %s7 = inlined_call_operand.hbm [shape: f32[32,32], index: 7, kind: input, shape index: {}]
  %s8 = inlined_call_operand.vmem [shape: f32[1,32], index: 8, kind: input, shape index: {}]
  %s9 = inlined_call_operand.hbm [shape: f32[1,32], index: 9, kind: input, shape index: {}]
  %s10 = inlined_call_operand.hbm [shape: f32[2,1,32], index: 10, kind: output, shape index: {}]
  %s11 = sld [smem:[#allocation0]]
  $region81: #{text_encoder_forward.1} parent=0
    _
  %s13 = ssub.s32 1, %s11
  %s14 = scalar_select 0, %s13, %s11
  $region1: #{text_encoder_forward.1} parent=0
    #allocation2 [shape = 'u8[16384]{0}', space=vmem, size = 0x4000, scoped, tag = 'input window, operand 7, single buffered']
    #allocation3 [shape = 's32[2]{0}', space=sflag, size = 0x8, scoped, tag = 'scoped memory for text_encoder_forward.1']
    #allocation4 [shape = 's32[2]{0}', space=sflag, size = 0x8, scoped, tag = 'scoped memory for text_encoder_forward.1']
    #allocation5 [shape = 'u8[512]{0}', space=vmem, size = 0x400, scoped, tag = 'input window, operand 9, single buffered']
    #allocation6 [shape = 's32[1]{0}', space=sflag, size = 0x4, scoped, tag = 'scoped memory for text_encoder_forward.1']
    #allocation7 [shape = 'u8[1024]{0}', space=vmem, size = 0x400, scoped, tag = 'output window, operand 0']
    %15 = vsyncpa [#allocation3], 0
    %16 = vsyncpa [#allocation6], 0
    %17 = vsyncpa [#allocation4], 0
    %s18 = scalar_lea.sflag [#allocation4], 1
    %19 = vsyncpa %s18, 0
    loop: start=0, step=1, limit=4
    $region2: #{text_encoder_forward.1} parent=1 // loop_pre_header
      _
    $region3: #{text_encoder_forward.1} parent=1 // loop_header
      %s21 = sphi 0, %s25
      %p22 = scmp.ge.s32.totalorder %s21, 4
      %s31 = sphi 0, %s33
      %s34 = sphi 0, %s31
      %s35 = sphi 0, %s34
      %s51 = sphi 0, %s35
      %s57 = sphi 0, %s59
      %s60 = sphi 0, %s57
      %s61 = sphi 0, %s60
      %s77 = sphi 0, %s61
      %s83 = sphi 0, %s85
      %s86 = sphi 0, %s83
      %s87 = sphi 0, %s86
      %s103 = sphi 0, %s87
      %s107 = sphi 0, %s107
      %s109 = sphi 0, %s107
      %s110 = sphi 0, %s109
      %s124 = sphi 0, %s110
      %s128 = sphi 0, %s128
      %s130 = sphi 0, %s128
      %s131 = sphi 0, %s130
      %s145 = sphi 0, %s131
      %s149 = sphi 0, %s149
      %s151 = sphi 0, %s149
      %s152 = sphi 0, %s151
      %s166 = sphi 0, %s152
      %s170 = sphi 0, %s170
      %s172 = sphi 0, %s170
      %s173 = sphi 0, %s172
      %s187 = sphi 0, %s173
      %s191 = sphi 0, %s191
      %s193 = sphi 0, %s191
      %s194 = sphi 0, %s193
      %s208 = sphi 0, %s194
      %s212 = sphi 0, %s212
      %s214 = sphi 0, %s212
      %s215 = sphi 0, %s214
      %s229 = sphi 0, %s215
      %s233 = sphi 0, %s233
      %s235 = sphi 0, %s233
      %s236 = sphi 0, %s235
      %s250 = sphi 0, %s236
      %s256 = sphi 0, %s258
      %s259 = sphi 0, %s256
      %s260 = sphi 0, %s259
      %s276 = sphi 0, %s260
    $region4: #{text_encoder_forward.1} parent=1 // loop_header_branch
      %24 = sbr.rel (%p22) target = $region8
    $region5: #{text_encoder_forward.1} parent=1 // loop_body
      %s26 = ssub.s32 %s21, 1
      %s27 = ssub.s32 %s21, 2
      %s28 = sadd.s32 %s21, 1
      %s29 = ssub.s32 %s21, %s28
      %p30 = scmp.eq.s32.totalorder %s29, 0
      %s32 = sadd.s32 %s31, 1
      %s33 = scalar_select %p30, %s31, %s32
      %p36 = pneg %p30
      %p37 = scmp.eq.s32.totalorder %s21, 1
      %p38 = por %p36, %p37
      %p39 = scmp.ne.s32.totalorder %s31, %s34
      %p40 = scmp.eq.s32.totalorder %s21, 0
      %p41 = por %p39, %p40
      %p42 = scmp.ne.s32.totalorder %s31, %s34
      %p43 = scmp.eq.s32.totalorder %s26, 1
      %p44 = por %p42, %p43
      %p45 = scmp.ne.s32.totalorder %s34, %s35
      %p46 = scmp.eq.s32.totalorder %s26, 0
      %p47 = por %p45, %p46
      %p48 = scmp.ne.s32.totalorder %s34, %s35
      %p49 = scmp.eq.s32.totalorder %s27, 1
      %p50 = por %p48, %p49
      %p52 = scmp.ne.s32.totalorder %s35, %s51
      %p53 = scmp.eq.s32.totalorder %s27, 0
      %p54 = por %p52, %p53
      %s55 = ssub.s32 %s21, %s28
      %p56 = scmp.eq.s32.totalorder %s55, 0
      %s58 = sadd.s32 %s57, 1
      %s59 = scalar_select %p56, %s57, %s58
      %p62 = pneg %p56
      %p63 = scmp.eq.s32.totalorder %s21, 1
      %p64 = por %p62, %p63
      %p65 = scmp.ne.s32.totalorder %s57, %s60
      %p66 = scmp.eq.s32.totalorder %s21, 0
      %p67 = por %p65, %p66
      %p68 = scmp.ne.s32.totalorder %s57, %s60
      %p69 = scmp.eq.s32.totalorder %s26, 1
      %p70 = por %p68, %p69
      %p71 = scmp.ne.s32.totalorder %s60, %s61
      %p72 = scmp.eq.s32.totalorder %s26, 0
      %p73 = por %p71, %p72
      %p74 = scmp.ne.s32.totalorder %s60, %s61
      %p75 = scmp.eq.s32.totalorder %s27, 1
      %p76 = por %p74, %p75
      %p78 = scmp.ne.s32.totalorder %s61, %s77
      %p79 = scmp.eq.s32.totalorder %s27, 0
      %p80 = por %p78, %p79
      %s81 = ssub.s32 %s21, %s28
      %p82 = scmp.eq.s32.totalorder %s81, 0
      %s84 = sadd.s32 %s83, 1
      %s85 = scalar_select %p82, %s83, %s84
      %p88 = pneg %p82
      %p89 = scmp.eq.s32.totalorder %s21, 1
      %p90 = por %p88, %p89
      %p91 = scmp.ne.s32.totalorder %s83, %s86
      %p92 = scmp.eq.s32.totalorder %s21, 0
      %p93 = por %p91, %p92
      %p94 = scmp.ne.s32.totalorder %s83, %s86
      %p95 = scmp.eq.s32.totalorder %s26, 1
      %p96 = por %p94, %p95
      %p97 = scmp.ne.s32.totalorder %s86, %s87
      %p98 = scmp.eq.s32.totalorder %s26, 0
      %p99 = por %p97, %p98
      %p100 = scmp.ne.s32.totalorder %s86, %s87
      %p101 = scmp.eq.s32.totalorder %s27, 1
      %p102 = por %p100, %p101
      %p104 = scmp.ne.s32.totalorder %s87, %s103
      %p105 = scmp.eq.s32.totalorder %s27, 0
      %p106 = por %p104, %p105
      %s108 = sadd.s32 %s107, 1
      %p111 = scmp.eq.s32.totalorder %s21, 1
      %p112 = scmp.ne.s32.totalorder %s107, %s109
      %p113 = scmp.eq.s32.totalorder %s21, 0
      %p114 = por %p112, %p113
      %p115 = scmp.ne.s32.totalorder %s107, %s109
      %p116 = scmp.eq.s32.totalorder %s26, 1
      %p117 = por %p115, %p116
      %p118 = scmp.ne.s32.totalorder %s109, %s110
      %p119 = scmp.eq.s32.totalorder %s26, 0
      %p120 = por %p118, %p119
      %p121 = scmp.ne.s32.totalorder %s109, %s110
      %p122 = scmp.eq.s32.totalorder %s27, 1
      %p123 = por %p121, %p122
      %p125 = scmp.ne.s32.totalorder %s110, %s124
      %p126 = scmp.eq.s32.totalorder %s27, 0
      %p127 = por %p125, %p126
      %s129 = sadd.s32 %s128, 1
      %p132 = scmp.eq.s32.totalorder %s21, 1
      %p133 = scmp.ne.s32.totalorder %s128, %s130
      %p134 = scmp.eq.s32.totalorder %s21, 0
      %p135 = por %p133, %p134
      %p136 = scmp.ne.s32.totalorder %s128, %s130
      %p137 = scmp.eq.s32.totalorder %s26, 1
      %p138 = por %p136, %p137
      %p139 = scmp.ne.s32.totalorder %s130, %s131
      %p140 = scmp.eq.s32.totalorder %s26, 0
      %p141 = por %p139, %p140
      %p142 = scmp.ne.s32.totalorder %s130, %s131
      %p143 = scmp.eq.s32.totalorder %s27, 1
      %p144 = por %p142, %p143
      %p146 = scmp.ne.s32.totalorder %s131, %s145
      %p147 = scmp.eq.s32.totalorder %s27, 0
      %p148 = por %p146, %p147
      %s150 = sadd.s32 %s149, 1
      %p153 = scmp.eq.s32.totalorder %s21, 1
      %p154 = scmp.ne.s32.totalorder %s149, %s151
      %p155 = scmp.eq.s32.totalorder %s21, 0
      %p156 = por %p154, %p155
      %p157 = scmp.ne.s32.totalorder %s149, %s151
      %p158 = scmp.eq.s32.totalorder %s26, 1
      %p159 = por %p157, %p158
      %p160 = scmp.ne.s32.totalorder %s151, %s152
      %p161 = scmp.eq.s32.totalorder %s26, 0
      %p162 = por %p160, %p161
      %p163 = scmp.ne.s32.totalorder %s151, %s152
      %p164 = scmp.eq.s32.totalorder %s27, 1
      %p165 = por %p163, %p164
      %p167 = scmp.ne.s32.totalorder %s152, %s166
      %p168 = scmp.eq.s32.totalorder %s27, 0
      %p169 = por %p167, %p168
      %s171 = sadd.s32 %s170, 1
      %p174 = scmp.eq.s32.totalorder %s21, 1
      %p175 = scmp.ne.s32.totalorder %s170, %s172
      %p176 = scmp.eq.s32.totalorder %s21, 0
      %p177 = por %p175, %p176
      %p178 = scmp.ne.s32.totalorder %s170, %s172
      %p179 = scmp.eq.s32.totalorder %s26, 1
      %p180 = por %p178, %p179
      %p181 = scmp.ne.s32.totalorder %s172, %s173
      %p182 = scmp.eq.s32.totalorder %s26, 0
      %p183 = por %p181, %p182
      %p184 = scmp.ne.s32.totalorder %s172, %s173
      %p185 = scmp.eq.s32.totalorder %s27, 1
      %p186 = por %p184, %p185
      %p188 = scmp.ne.s32.totalorder %s173, %s187
      %p189 = scmp.eq.s32.totalorder %s27, 0
      %p190 = por %p188, %p189
      %s192 = sadd.s32 %s191, 1
      %p195 = scmp.eq.s32.totalorder %s21, 1
      %p196 = scmp.ne.s32.totalorder %s191, %s193
      %p197 = scmp.eq.s32.totalorder %s21, 0
      %p198 = por %p196, %p197
      %p199 = scmp.ne.s32.totalorder %s191, %s193
      %p200 = scmp.eq.s32.totalorder %s26, 1
      %p201 = por %p199, %p200
      %p202 = scmp.ne.s32.totalorder %s193, %s194
      %p203 = scmp.eq.s32.totalorder %s26, 0
      %p204 = por %p202, %p203
      %p205 = scmp.ne.s32.totalorder %s193, %s194
      %p206 = scmp.eq.s32.totalorder %s27, 1
      %p207 = por %p205, %p206
      %p209 = scmp.ne.s32.totalorder %s194, %s208
      %p210 = scmp.eq.s32.totalorder %s27, 0
      %p211 = por %p209, %p210
      %s213 = sadd.s32 %s212, 1
      %p216 = scmp.eq.s32.totalorder %s21, 1
      %p217 = scmp.ne.s32.totalorder %s212, %s214
      %p218 = scmp.eq.s32.totalorder %s21, 0
      %p219 = por %p217, %p218
      %p220 = scmp.ne.s32.totalorder %s212, %s214
      %p221 = scmp.eq.s32.totalorder %s26, 1
      %p222 = por %p220, %p221
      %p223 = scmp.ne.s32.totalorder %s214, %s215
      %p224 = scmp.eq.s32.totalorder %s26, 0
      %p225 = por %p223, %p224
      %p226 = scmp.ne.s32.totalorder %s214, %s215
      %p227 = scmp.eq.s32.totalorder %s27, 1
      %p228 = por %p226, %p227
      %p230 = scmp.ne.s32.totalorder %s215, %s229
      %p231 = scmp.eq.s32.totalorder %s27, 0
      %p232 = por %p230, %p231
      %s234 = sadd.s32 %s233, 1
      %p237 = scmp.eq.s32.totalorder %s21, 1
      %p238 = scmp.ne.s32.totalorder %s233, %s235
      %p239 = scmp.eq.s32.totalorder %s21, 0
      %p240 = por %p238, %p239
      %p241 = scmp.ne.s32.totalorder %s233, %s235
      %p242 = scmp.eq.s32.totalorder %s26, 1
      %p243 = por %p241, %p242
      %p244 = scmp.ne.s32.totalorder %s235, %s236
      %p245 = scmp.eq.s32.totalorder %s26, 0
      %p246 = por %p244, %p245
      %p247 = scmp.ne.s32.totalorder %s235, %s236
      %p248 = scmp.eq.s32.totalorder %s27, 1
      %p249 = por %p247, %p248
      %p251 = scmp.ne.s32.totalorder %s236, %s250
      %p252 = scmp.eq.s32.totalorder %s27, 0
      %p253 = por %p251, %p252
      %s254 = ssub.s32 %s21, %s28
      %p255 = scmp.eq.s32.totalorder %s254, 0
      %s257 = sadd.s32 %s256, 1
      %s258 = scalar_select %p255, %s256, %s257
      %p261 = pneg %p255
      %p262 = scmp.eq.s32.totalorder %s21, 1
      %p263 = por %p261, %p262
      %p264 = scmp.ne.s32.totalorder %s256, %s259
      %p265 = scmp.eq.s32.totalorder %s21, 0
      %p266 = por %p264, %p265
      %p267 = scmp.ne.s32.totalorder %s256, %s259
      %p268 = scmp.eq.s32.totalorder %s26, 1
      %p269 = por %p267, %p268
      %p270 = scmp.ne.s32.totalorder %s259, %s260
      %p271 = scmp.eq.s32.totalorder %s26, 0
      %p272 = por %p270, %p271
      %p273 = scmp.ne.s32.totalorder %s259, %s260
      %p274 = scmp.eq.s32.totalorder %s27, 1
      %p275 = por %p273, %p274
      %p277 = scmp.ne.s32.totalorder %s260, %s276
      %p278 = scmp.eq.s32.totalorder %s27, 0
      %p279 = por %p277, %p278
      %p280 = scmp.le.s32.totalorder 1, %s21
      %p281 = scmp.lt.s32.totalorder %s21, 3
      %p282 = pnand %p280, %p281
      %p283 = pneg %p282
      // Predicated region
      $region9: #{text_encoder_forward.1} parent=5 // pred_check
        _
      $region10: #{text_encoder_forward.1} parent=5 // pred_check_branch
        %285 = sbr.rel (%p282) target = $region12
      $region11: #{text_encoder_forward.1} parent=5 // pred_region
        %s286 = ssub.s32 %s21, 1
        // Predicated region
        $region13: #{text_encoder_forward.1} parent=11 // pred_check
          %p287 = pneg %p120
        $region14: #{text_encoder_forward.1} parent=11 // pred_check_branch
          %289 = sbr.rel (%p287) target = $region16
        $region15: #{text_encoder_forward.1} parent=11 // pred_region
          _
        $region16: #{text_encoder_forward.1} parent=11 // pred_fallthru
          _
        // Predicated region
        $region17: #{text_encoder_forward.1} parent=11 // pred_check
          %p290 = pneg %p141
        $region18: #{text_encoder_forward.1} parent=11 // pred_check_branch
          %292 = sbr.rel (%p290) target = $region20
        $region19: #{text_encoder_forward.1} parent=11 // pred_region
          _
        $region20: #{text_encoder_forward.1} parent=11 // pred_fallthru
          _
        // Predicated region
        $region21: #{text_encoder_forward.1} parent=11 // pred_check
          %p293 = pneg %p162
        $region22: #{text_encoder_forward.1} parent=11 // pred_check_branch
          %295 = sbr.rel (%p293) target = $region24
        $region23: #{text_encoder_forward.1} parent=11 // pred_region
          _
        $region24: #{text_encoder_forward.1} parent=11 // pred_fallthru
          _
        // Predicated region
        $region25: #{text_encoder_forward.1} parent=11 // pred_check
          %p296 = pneg %p183
        $region26: #{text_encoder_forward.1} parent=11 // pred_check_branch
          %298 = sbr.rel (%p296) target = $region28
        $region27: #{text_encoder_forward.1} parent=11 // pred_region
          _
        $region28: #{text_encoder_forward.1} parent=11 // pred_fallthru
          _
        // Predicated region
        $region29: #{text_encoder_forward.1} parent=11 // pred_check
          %p299 = pneg %p204
        $region30: #{text_encoder_forward.1} parent=11 // pred_check_branch
          %301 = sbr.rel (%p299) target = $region32
        $region31: #{text_encoder_forward.1} parent=11 // pred_region
          %s303 = ssub.s32 512, 512
          %304 = vsyncadd [#allocation3], %s303
          %s305 = sshll.u32 [#allocation2], 4
          %s306 = int_to_ptr.vmem [resolvable:$true] %s305
          %311 = dma.hbm_to_vmem [thread:$0]  %s7, 512, %s306, [#allocation3], 128, 128, 8
        $region32: #{text_encoder_forward.1} parent=11 // pred_fallthru
          _
        // Predicated region
        $region33: #{text_encoder_forward.1} parent=11 // pred_check
          %p312 = pneg %p225
        $region34: #{text_encoder_forward.1} parent=11 // pred_check_branch
          %314 = sbr.rel (%p312) target = $region36
        $region35: #{text_encoder_forward.1} parent=11 // pred_region
          _
        $region36: #{text_encoder_forward.1} parent=11 // pred_fallthru
          _
        // Predicated region
        $region37: #{text_encoder_forward.1} parent=11 // pred_check
          %p315 = pneg %p246
        $region38: #{text_encoder_forward.1} parent=11 // pred_check_branch
          %317 = sbr.rel (%p315) target = $region40
        $region39: #{text_encoder_forward.1} parent=11 // pred_region
          %s319 = ssub.s32 16, 16
          %320 = vsyncadd [#allocation6], %s319
          %s322 = sshll.u32 [#allocation5], 4
          %s323 = int_to_ptr.vmem [resolvable:$true] %s322
          %325 = dma.hbm_to_vmem [thread:$0]  %s9, 16, %s323, [#allocation6]
        $region40: #{text_encoder_forward.1} parent=11 // pred_fallthru
          _
      $region12: #{text_encoder_forward.1} parent=5 // pred_fallthru
        _
      %p326 = scmp.lt.s32.totalorder %s21, 2
      // Predicated region
      $region41: #{text_encoder_forward.1} parent=5 // pred_check
        %p327 = pneg %p326
      $region42: #{text_encoder_forward.1} parent=5 // pred_check_branch
        %329 = sbr.rel (%p327) target = $region44
      $region43: #{text_encoder_forward.1} parent=5 // pred_region
        // Predicated region
        $region45: #{text_encoder_forward.1} parent=43 // pred_check
          %p330 = pneg %p41
        $region46: #{text_encoder_forward.1} parent=43 // pred_check_branch
          %332 = sbr.rel (%p330) target = $region48
        $region47: #{text_encoder_forward.1} parent=43 // pred_region
          %p333 = scmp.lt.s32.totalorder %s21, 1
          %s334 = scalar_select %p333, %s21, 1
          %s335 = smul.addr %s334, 8
          %s336 = scalar_lea.vmem %s0, %s335
        $region48: #{text_encoder_forward.1} parent=43 // pred_fallthru
          _
        // Predicated region
        $region49: #{text_encoder_forward.1} parent=43 // pred_check
          %p337 = pneg %p67
        $region50: #{text_encoder_forward.1} parent=43 // pred_check_branch
          %339 = sbr.rel (%p337) target = $region52
        $region51: #{text_encoder_forward.1} parent=43 // pred_region
          %p340 = scmp.lt.s32.totalorder %s21, 1
          %s341 = scalar_select %p340, %s21, 1
          %s342 = scalar_lea.vmem %s1, %s341
        $region52: #{text_encoder_forward.1} parent=43 // pred_fallthru
          _
        // Predicated region
        $region53: #{text_encoder_forward.1} parent=43 // pred_check
          %p343 = pneg %p93
        $region54: #{text_encoder_forward.1} parent=43 // pred_check_branch
          %345 = sbr.rel (%p343) target = $region56
        $region55: #{text_encoder_forward.1} parent=43 // pred_region
          %p346 = scmp.lt.s32.totalorder %s21, 1
          %s347 = scalar_select %p346, %s21, 1
          %s348 = smul.addr %s347, 8
          %s349 = scalar_lea.vmem %s2, %s348
        $region56: #{text_encoder_forward.1} parent=43 // pred_fallthru
          _
      $region44: #{text_encoder_forward.1} parent=5 // pred_fallthru
        _
      %p350 = scmp.le.s32.totalorder 1, %s21
      %p351 = scmp.lt.s32.totalorder %s21, 3
      %p352 = pnand %p350, %p351
      %p353 = pneg %p352
      // Predicated region
      $region57: #{text_encoder_forward.1} parent=5 // pred_check
        _
      $region58: #{text_encoder_forward.1} parent=5 // pred_check_branch
        %355 = sbr.rel (%p352) target = $region60
      $region59: #{text_encoder_forward.1} parent=5 // pred_region
        %s356 = ssub.s32 %s21, 1
        // Predicated region
        $region61: #{text_encoder_forward.1} parent=59 // pred_check
          %p357 = pneg %p204
        $region62: #{text_encoder_forward.1} parent=59 // pred_check_branch
          %359 = sbr.rel (%p357) target = $region64
        $region63: #{text_encoder_forward.1} parent=59 // pred_region
          %360 = dma.done [#allocation3], 512
        $region64: #{text_encoder_forward.1} parent=59 // pred_fallthru
          _
        // Predicated region
        $region65: #{text_encoder_forward.1} parent=59 // pred_check
          %p361 = pneg %p246
        $region66: #{text_encoder_forward.1} parent=59 // pred_check_branch
          %363 = sbr.rel (%p361) target = $region68
        $region67: #{text_encoder_forward.1} parent=59 // pred_region
          %364 = dma.done [#allocation6], 16
        $region68: #{text_encoder_forward.1} parent=59 // pred_fallthru
          _
        %p365 = scmp.lt.s32.totalorder %s26, 1
        %s366 = scalar_select %p365, %s26, 1
        %s367 = smul.addr %s366, 8
        %s368 = scalar_lea.vmem %s0, %s367
        %p369 = pneg %p47
        %p370 = pneg %p44
        %p371 = scmp.lt.s32.totalorder %s26, 1
        %s372 = scalar_select %p371, %s26, 1
        %s373 = scalar_lea.vmem %s1, %s372
        %p374 = pneg %p73
        %p375 = pneg %p70
        %p376 = scmp.lt.s32.totalorder %s26, 1
        %s377 = scalar_select %p376, %s26, 1
        %s378 = smul.addr %s377, 8
        %s379 = scalar_lea.vmem %s2, %s378
        %p380 = pneg %p99
        %p381 = pneg %p96
        %p382 = pneg %p120
        %p383 = pneg %p117
        %p384 = pneg %p141
        %p385 = pneg %p138
        %p386 = pneg %p162
        %p387 = pneg %p159
        %p388 = pneg %p183
        %p389 = pneg %p180
        %p390 = pneg %p204
        %p391 = pneg %p201
        %p392 = pneg %p225
        %p393 = pneg %p222
        %p394 = pneg %p246
        %p395 = pneg %p243
        %p396 = pneg %p272
        %p397 = pneg %p269
        %s398 = sand.u32 %s259, 1
        %s399 = scalar_lea.sflag [#allocation4], %s398
        %s400 = sand.u32 %s259, 1
        %s401 = scalar_lea.vmem [#allocation7], %s400
        %p402 = scmp.lt.s32.totalorder %s26, 1
        %s403 = scalar_select %p402, %s26, 1
        %s404 = smul.addr %s403, 8
        %s405 = scalar_lea.vmem %s0, %s404
        %p406 = scmp.lt.s32.totalorder %s26, 1
        %s407 = scalar_select %p406, %s26, 1
        %s408 = scalar_lea.vmem %s1, %s407
        %p409 = scmp.lt.s32.totalorder %s26, 1
        %s410 = scalar_select %p409, %s26, 1
        %s411 = smul.addr %s410, 8
        %s412 = scalar_lea.vmem %s2, %s411
        %v413 = vld [vmem:[%s405] sm:$0xff]
        %v414 = vld [vmem:[%s408] sm:$0x1]
        %v415 = vld [vmem:[%s412] sm:$0xff]
        %v416 = vld [vmem:[%s3] sm:$0xff]
        %v417 = vadd.f32 %v413, %v416
        %v418 = vld [vmem:[%s4] sm:$0x1]
        %v419 = vld [vmem:[%s4 + $0x1] sm:$0x1]
        %vm420 = vcmask 261120
        %v421 = vsel %vm420, %v417, 0.0
        %422 = vadd.xlane.f32.xlu0 %v421
        %v423 = vpop.xlane.xlu0 %422
        %v424 = vrcp.pop 32.0
        %v425 = vmul.f32 %v423, %v424
        %v426 = vsub.f32 %v417, %v425
        %v427 = vmul.f32 %v426, %v426
        %v428 = vsel %vm420, %v427, 0.0
        %429 = vadd.xlane.f32.xlu0 %v428
        %v430 = vpop.xlane.xlu0 %429
        %v431 = vmul.f32 %v430, %v424
        %v432 = vadd.f32 %v431, 1e-05
        %v433 = vrsqrt.pop %v432
        %v434 = vmul.f32 %v426, %v433
        %v435 = vlaneseq
        %v436 = vshrl.u32 %v435, 7
        %v437 = vsub.s32 0, %v436
        %v438 = vrot.slane %v418, %v437
        %v439 = vmul.f32 %v434, %v438
        %v440 = vlaneseq
        %v441 = vshrl.u32 %v440, 7
        %v442 = vsub.s32 0, %v441
        %v443 = vrot.slane %v419, %v442
        %v444 = vadd.f32 %v439, %v443
        %v445 = vld [vmem:[%s5] sm:$0xff]
        %v446 = vld [vmem:[%s5 + $0x8] sm:$0xff]
        %v447 = vld [vmem:[%s5 + $0x10] sm:$0xff]
        %v448 = vld [vmem:[%s5 + $0x18] sm:$0xff]
        %v449 = vld [vmem:[%s6] sm:$0x1]
        %v451 = vlaneseq
        %v452 = vshrl.u32 %v451, 7
        %v453 = vsub.s32 0, %v452
        %v454 = vrot.slane %v449, %v453
        %v457 = vsel %vm420, %v444, 0
        %459 = vmatprep.subr.mxu0 0.0
        %460 = vmatpush1.msra.mxu0 %v445
        %461 = vmatprep.subr.mxu0 0.0
        %462 = vmatpush1.msra.mxu0 %v446
        %463 = vmatprep.subr.mxu0 0.0
        %464 = vmatpush1.msra.mxu0 %v447
        %465 = vmatprep.subr.mxu0 0.0
        %466 = vmatpush1.msra.mxu0 %v448
        %467 = vmatprep.subr.mxu0 0.0
        %468 = vmatpush1.msra.mxu0 0.0
        %469 = vmatprep.subr.mxu0 0.0
        %470 = vmatpush1.msra.mxu0 0.0
        %471 = vmatprep.subr.mxu0 0.0
        %472 = vmatpush1.msra.mxu0 0.0
        %473 = vmatprep.subr.mxu0 0.0
        %474 = vmatpush1.msra.mxu0 0.0
        %475 = vmatprep.subr.mxu0 0.0
        %476 = vmatpush1.msra.mxu0 0.0
        %477 = vmatprep.subr.mxu0 0.0
        %478 = vmatpush1.msra.mxu0 0.0
        %479 = vmatprep.subr.mxu0 0.0
        %480 = vmatpush1.msra.mxu0 0.0
        %481 = vmatprep.subr.mxu0 0.0
        %482 = vmatpush1.msra.mxu0 0.0
        %483 = vmatprep.subr.mxu0 0.0
        %484 = vmatpush1.msra.mxu0 0.0
        %485 = vmatprep.subr.mxu0 0.0
        %486 = vmatpush1.msra.mxu0 0.0
        %487 = vmatprep.subr.mxu0 0.0
        %488 = vmatpush1.msra.mxu0 0.0
        %489 = vmatprep.subr.mxu0 0.0
        %490 = vmatpush1.msra.mxu0 0.0
        %491 = vmatprep.subr.mxu0 0.0
        %492 = vmatpush1.msra.mxu0 0.0
        %493 = vmatprep.subr.mxu0 0.0
        %494 = vmatpush1.msra.mxu0 0.0
        %495 = vmatprep.subr.mxu0 0.0
        %496 = vmatpush1.msra.mxu0 0.0
        %497 = vmatprep.subr.mxu0 0.0
        %498 = vmatpush1.msra.mxu0 0.0
        %499 = vmatprep.subr.mxu0 0.0
        %500 = vmatpush1.msra.mxu0 0.0
        %501 = vmatprep.subr.mxu0 0.0
        %502 = vmatpush1.msra.mxu0 0.0
        %503 = vmatprep.subr.mxu0 0.0
        %504 = vmatpush1.msra.mxu0 0.0
        %505 = vmatprep.subr.mxu0 0.0
        %506 = vmatpush1.msra.mxu0 0.0
        %507 = vmatprep.subr.mxu0 0.0
        %508 = vmatpush1.msra.mxu0 0.0
        %509 = vmatprep.subr.mxu0 0.0
        %510 = vmatpush1.msra.mxu0 0.0
        %511 = vmatprep.subr.mxu0 0.0
        %512 = vmatpush1.msra.mxu0 0.0
        %513 = vmatprep.subr.mxu0 0.0
        %514 = vmatpush1.msra.mxu0 0.0
        %515 = vmatprep.subr.mxu0 0.0
        %516 = vmatpush1.msra.mxu0 0.0
        %517 = vmatprep.subr.mxu0 0.0
        %518 = vmatpush1.msra.mxu0 0.0
        %519 = vmatprep.subr.mxu0 0.0
        %520 = vmatpush1.msra.mxu0 0.0
        %521 = vmatprep.subr.mxu0 0.0
        %522 = vmatpush1.msra.mxu0 0.0
        %523 = vmatprep.mubr.f32.mxu0 0.0
        %524 = vmatmul.mubr.f32.gmra.mrb[0].mxu0 %v457
        %v525 = vpop.f32.mrb[0].mxu0
        %v526 = vadd.f32 %v454, %v525
        %v527 = vpop.f32.mrb[0].mxu0
        %528 = vdwg.mxu0
        %v529 = vsub.f32 1.0, %v414
        %v530 = vmul.f32 %v529, -10000.0
        %v531 = vmul.f32 %v526, 0.25
        %v533 = vlaneseq
        %v534 = vshrl.u32 %v533, 7
        %v535 = vsub.s32 0, %v534
        %v536 = vrot.slane %v530, %v535
        %539 = vrot.lane.b32.xlu0 %v526, 96
        %v540 = vpop.permute.xlu0 %539
        %vm541 = vcmask 130048
        %v543 = vsel %vm541, %v531, 0
        %v545 = vsel %vm541, %v540, 0
        %547 = vmatprep.subr.mxu0 0.0
        %548 = vmatpush1.xpose.msra.mxu0 %v545
        %549 = vmatprep.subr.mxu0 0.0
        %550 = vmatpush1.xpose.msra.mxu0 0.0
        %551 = vmatprep.subr.mxu0 0.0
        %552 = vmatpush1.xpose.msra.mxu0 0.0
        %553 = vmatprep.subr.mxu0 0.0
        %554 = vmatpush1.xpose.msra.mxu0 0.0
        %555 = vmatprep.subr.mxu0 0.0
        %556 = vmatpush1.xpose.msra.mxu0 0.0
        %557 = vmatprep.subr.mxu0 0.0
        %558 = vmatpush1.xpose.msra.mxu0 0.0
        %559 = vmatprep.subr.mxu0 0.0
        %560 = vmatpush1.xpose.msra.mxu0 0.0
        %561 = vmatprep.subr.mxu0 0.0
        %562 = vmatpush1.xpose.msra.mxu0 0.0
        %563 = vmatprep.subr.mxu0 0.0
        %564 = vmatpush1.xpose.msra.mxu0 0.0
        %565 = vmatprep.subr.mxu0 0.0
        %566 = vmatpush1.xpose.msra.mxu0 0.0
        %567 = vmatprep.subr.mxu0 0.0
        %568 = vmatpush1.xpose.msra.mxu0 0.0
        %569 = vmatprep.subr.mxu0 0.0
        %570 = vmatpush1.xpose.msra.mxu0 0.0
        %571 = vmatprep.subr.mxu0 0.0
        %572 = vmatpush1.xpose.msra.mxu0 0.0
        %573 = vmatprep.subr.mxu0 0.0
        %574 = vmatpush1.xpose.msra.mxu0 0.0
        %575 = vmatprep.subr.mxu0 0.0
        %576 = vmatpush1.xpose.msra.mxu0 0.0
        %577 = vmatprep.subr.mxu0 0.0
        %578 = vmatpush1.xpose.msra.mxu0 0.0
        %579 = vmatprep.subr.mxu0 0.0
        %580 = vmatpush1.xpose.msra.mxu0 0.0
        %581 = vmatprep.subr.mxu0 0.0
        %582 = vmatpush1.xpose.msra.mxu0 0.0
        %583 = vmatprep.subr.mxu0 0.0
        %584 = vmatpush1.xpose.msra.mxu0 0.0
        %585 = vmatprep.subr.mxu0 0.0
        %586 = vmatpush1.xpose.msra.mxu0 0.0
        %587 = vmatprep.subr.mxu0 0.0
        %588 = vmatpush1.xpose.msra.mxu0 0.0
        %589 = vmatprep.subr.mxu0 0.0
        %590 = vmatpush1.xpose.msra.mxu0 0.0
        %591 = vmatprep.subr.mxu0 0.0
        %592 = vmatpush1.xpose.msra.mxu0 0.0
        %593 = vmatprep.subr.mxu0 0.0
        %594 = vmatpush1.xpose.msra.mxu0 0.0
        %595 = vmatprep.subr.mxu0 0.0
        %596 = vmatpush1.xpose.msra.mxu0 0.0
        %597 = vmatprep.subr.mxu0 0.0
        %598 = vmatpush1.xpose.msra.mxu0 0.0
        %599 = vmatprep.subr.mxu0 0.0
        %600 = vmatpush1.xpose.msra.mxu0 0.0
        %601 = vmatprep.subr.mxu0 0.0
        %602 = vmatpush1.xpose.msra.mxu0 0.0
        %603 = vmatprep.subr.mxu0 0.0
        %604 = vmatpush1.xpose.msra.mxu0 0.0
        %605 = vmatprep.subr.mxu0 0.0
        %606 = vmatpush1.xpose.msra.mxu0 0.0
        %607 = vmatprep.subr.mxu0 0.0
        %608 = vmatpush1.xpose.msra.mxu0 0.0
        %609 = vmatprep.subr.mxu0 0.0
        %610 = vmatpush1.xpose.msra.mxu0 0.0
        %611 = vmatprep.mubr.f32.mxu0 0.0
        %612 = vmatmul.mubr.f32.gmra.mrb[0].mxu0 %v543
        %v613 = vpop.f32.mrb[0].mxu0
        %v614 = vadd.f32 %v536, %v613
        %v615 = vpop.f32.mrb[0].mxu0
        %616 = vdwg.mxu0
        %vm617 = vcmask 64512
        %v618 = vsel %vm617, %v614, -inf
        %619 = vmax.xlane.f32.xlu0 %v618
        %v620 = vpop.xlane.xlu0 %619
        %v621 = vsub.f32 %v614, %v620
        %v622 = vmul.f32 %v621, 1.442695
        %v623 = vpow.pop %v622
        %v624 = vsel %vm617, %v623, 0.0
        %625 = vadd.xlane.f32.xlu0 %v624
        %v626 = vpop.xlane.xlu0 %625
        %v627 = vrcp.pop %v626
        %v628 = vmul.f32 %v623, %v627
        %629 = vrot.lane.b32.xlu0 %v526, 64
        %v630 = vpop.permute.xlu0 %629
        %v633 = vsel %vm617, %v628, 0
        %635 = vmatprep.subr.mxu0 0.0
        %636 = vmatpush1.msra.mxu0 %v630
        %637 = vmatprep.subr.mxu0 0.0
        %638 = vmatpush1.msra.mxu0 0.0
        %639 = vmatprep.subr.mxu0 0.0
        %640 = vmatpush1.msra.mxu0 0.0
        %641 = vmatprep.subr.mxu0 0.0
        %642 = vmatpush1.msra.mxu0 0.0
        %643 = vmatprep.subr.mxu0 0.0
        %644 = vmatpush1.msra.mxu0 0.0
        %645 = vmatprep.subr.mxu0 0.0
        %646 = vmatpush1.msra.mxu0 0.0
        %647 = vmatprep.subr.mxu0 0.0
        %648 = vmatpush1.msra.mxu0 0.0
        %649 = vmatprep.subr.mxu0 0.0
        %650 = vmatpush1.msra.mxu0 0.0
        %651 = vmatprep.subr.mxu0 0.0
        %652 = vmatpush1.msra.mxu0 0.0
        %653 = vmatprep.subr.mxu0 0.0
        %654 = vmatpush1.msra.mxu0 0.0
        %655 = vmatprep.subr.mxu0 0.0
        %656 = vmatpush1.msra.mxu0 0.0
        %657 = vmatprep.subr.mxu0 0.0
        %658 = vmatpush1.msra.mxu0 0.0
        %659 = vmatprep.subr.mxu0 0.0
        %660 = vmatpush1.msra.mxu0 0.0
        %661 = vmatprep.subr.mxu0 0.0
        %662 = vmatpush1.msra.mxu0 0.0
        %663 = vmatprep.subr.mxu0 0.0
        %664 = vmatpush1.msra.mxu0 0.0
        %665 = vmatprep.subr.mxu0 0.0
        %666 = vmatpush1.msra.mxu0 0.0
        %667 = vmatprep.subr.mxu0 0.0
        %668 = vmatpush1.msra.mxu0 0.0
        %669 = vmatprep.subr.mxu0 0.0
        %670 = vmatpush1.msra.mxu0 0.0
        %671 = vmatprep.subr.mxu0 0.0
        %672 = vmatpush1.msra.mxu0 0.0
        %673 = vmatprep.subr.mxu0 0.0
        %674 = vmatpush1.msra.mxu0 0.0
        %675 = vmatprep.subr.mxu0 0.0
        %676 = vmatpush1.msra.mxu0 0.0
        %677 = vmatprep.subr.mxu0 0.0
        %678 = vmatpush1.msra.mxu0 0.0
        %679 = vmatprep.subr.mxu0 0.0
        %680 = vmatpush1.msra.mxu0 0.0
        %681 = vmatprep.subr.mxu0 0.0
        %682 = vmatpush1.msra.mxu0 0.0
        %683 = vmatprep.subr.mxu0 0.0
        %684 = vmatpush1.msra.mxu0 0.0
        %685 = vmatprep.subr.mxu0 0.0
        %686 = vmatpush1.msra.mxu0 0.0
        %687 = vmatprep.subr.mxu0 0.0
        %688 = vmatpush1.msra.mxu0 0.0
        %689 = vmatprep.subr.mxu0 0.0
        %690 = vmatpush1.msra.mxu0 0.0
        %691 = vmatprep.subr.mxu0 0.0
        %692 = vmatpush1.msra.mxu0 0.0
        %693 = vmatprep.subr.mxu0 0.0
        %694 = vmatpush1.msra.mxu0 0.0
        %695 = vmatprep.subr.mxu0 0.0
        %696 = vmatpush1.msra.mxu0 0.0
        %697 = vmatprep.subr.mxu0 0.0
        %698 = vmatpush1.msra.mxu0 0.0
        %699 = vmatprep.mubr.f32.mxu0 0.0
        %700 = vmatmul.mubr.f32.gmra.mrb[0].mxu0 %v633
        %v701 = vpop.f32.mrb[0].mxu0
        %v702 = vadd.f32 0.0, %v701
        %v703 = vpop.f32.mrb[0].mxu0
        %704 = vdwg.mxu0
        %v705 = vld [vmem:[#allocation2] sm:$0xff]
        %v706 = vld [vmem:[#allocation2 + $0x8] sm:$0xff]
        %707 = vrot.lane.b32.xlu0 %v531, 112
        %v708 = vpop.permute.xlu0 %707
        %709 = vrot.lane.b32.xlu0 %v526, 80
        %v710 = vpop.permute.xlu0 %709
        %v711 = vsel %vm541, %v708, 0
        %v713 = vsel %vm541, %v710, 0
        %715 = vmatprep.subr.mxu0 0.0
        %716 = vmatpush1.xpose.msra.mxu0 %v713
        %717 = vmatprep.subr.mxu0 0.0
        %718 = vmatpush1.xpose.msra.mxu0 0.0
        %719 = vmatprep.subr.mxu0 0.0
        %720 = vmatpush1.xpose.msra.mxu0 0.0
        %721 = vmatprep.subr.mxu0 0.0
        %722 = vmatpush1.xpose.msra.mxu0 0.0
        %723 = vmatprep.subr.mxu0 0.0
        %724 = vmatpush1.xpose.msra.mxu0 0.0
        %725 = vmatprep.subr.mxu0 0.0
        %726 = vmatpush1.xpose.msra.mxu0 0.0
        %727 = vmatprep.subr.mxu0 0.0
        %728 = vmatpush1.xpose.msra.mxu0 0.0
        %729 = vmatprep.subr.mxu0 0.0
        %730 = vmatpush1.xpose.msra.mxu0 0.0
        %731 = vmatprep.subr.mxu0 0.0
        %732 = vmatpush1.xpose.msra.mxu0 0.0
        %733 = vmatprep.subr.mxu0 0.0
        %734 = vmatpush1.xpose.msra.mxu0 0.0
        %735 = vmatprep.subr.mxu0 0.0
        %736 = vmatpush1.xpose.msra.mxu0 0.0
        %737 = vmatprep.subr.mxu0 0.0
        %738 = vmatpush1.xpose.msra.mxu0 0.0
        %739 = vmatprep.subr.mxu0 0.0
        %740 = vmatpush1.xpose.msra.mxu0 0.0
        %741 = vmatprep.subr.mxu0 0.0
        %742 = vmatpush1.xpose.msra.mxu0 0.0
        %743 = vmatprep.subr.mxu0 0.0
        %744 = vmatpush1.xpose.msra.mxu0 0.0
        %745 = vmatprep.subr.mxu0 0.0
        %746 = vmatpush1.xpose.msra.mxu0 0.0
        %747 = vmatprep.subr.mxu0 0.0
        %748 = vmatpush1.xpose.msra.mxu0 0.0
        %749 = vmatprep.subr.mxu0 0.0
        %750 = vmatpush1.xpose.msra.mxu0 0.0
        %751 = vmatprep.subr.mxu0 0.0
        %752 = vmatpush1.xpose.msra.mxu0 0.0
        %753 = vmatprep.subr.mxu0 0.0
        %754 = vmatpush1.xpose.msra.mxu0 0.0
        %755 = vmatprep.subr.mxu0 0.0
        %756 = vmatpush1.xpose.msra.mxu0 0.0
        %757 = vmatprep.subr.mxu0 0.0
        %758 = vmatpush1.xpose.msra.mxu0 0.0
        %759 = vmatprep.subr.mxu0 0.0
        %760 = vmatpush1.xpose.msra.mxu0 0.0
        %761 = vmatprep.subr.mxu0 0.0
        %762 = vmatpush1.xpose.msra.mxu0 0.0
        %763 = vmatprep.subr.mxu0 0.0
        %764 = vmatpush1.xpose.msra.mxu0 0.0
        %765 = vmatprep.subr.mxu0 0.0
        %766 = vmatpush1.xpose.msra.mxu0 0.0
        %767 = vmatprep.subr.mxu0 0.0
        %768 = vmatpush1.xpose.msra.mxu0 0.0
        %769 = vmatprep.subr.mxu0 0.0
        %770 = vmatpush1.xpose.msra.mxu0 0.0
        %771 = vmatprep.subr.mxu0 0.0
        %772 = vmatpush1.xpose.msra.mxu0 0.0
        %773 = vmatprep.subr.mxu0 0.0
        %774 = vmatpush1.xpose.msra.mxu0 0.0
        %775 = vmatprep.subr.mxu0 0.0
        %776 = vmatpush1.xpose.msra.mxu0 0.0
        %777 = vmatprep.subr.mxu0 0.0
        %778 = vmatpush1.xpose.msra.mxu0 0.0
        %779 = vmatprep.mubr.f32.mxu0 0.0
        %780 = vmatmul.mubr.f32.gmra.mrb[0].mxu0 %v711
        %v781 = vpop.f32.mrb[0].mxu0
        %v782 = vadd.f32 %v536, %v781
        %v783 = vpop.f32.mrb[0].mxu0
        %784 = vdwg.mxu0
        %v785 = vsel %vm617, %v782, -inf
        %786 = vmax.xlane.f32.xlu0 %v785
        %v787 = vpop.xlane.xlu0 %786
        %v788 = vsub.f32 %v782, %v787
        %v789 = vmul.f32 %v788, 1.442695
        %v790 = vpow.pop %v789
        %v791 = vsel %vm617, %v790, 0.0
        %792 = vadd.xlane.f32.xlu0 %v791
        %v793 = vpop.xlane.xlu0 %792
        %v794 = vrcp.pop %v793
        %v795 = vmul.f32 %v790, %v794
        %796 = vrot.lane.b32.xlu0 %v526, 48
        %v797 = vpop.permute.xlu0 %796
        %v800 = vsel %vm617, %v795, 0
        %802 = vmatprep.subr.mxu0 0.0
        %803 = vmatpush1.msra.mxu0 %v797
        %804 = vmatprep.subr.mxu0 0.0
        %805 = vmatpush1.msra.mxu0 0.0
        %806 = vmatprep.subr.mxu0 0.0
        %807 = vmatpush1.msra.mxu0 0.0
        %808 = vmatprep.subr.mxu0 0.0
        %809 = vmatpush1.msra.mxu0 0.0
        %810 = vmatprep.subr.mxu0 0.0
        %811 = vmatpush1.msra.mxu0 0.0
        %812 = vmatprep.subr.mxu0 0.0
        %813 = vmatpush1.msra.mxu0 0.0
        %814 = vmatprep.subr.mxu0 0.0
        %815 = vmatpush1.msra.mxu0 0.0
        %816 = vmatprep.subr.mxu0 0.0
        %817 = vmatpush1.msra.mxu0 0.0
        %818 = vmatprep.subr.mxu0 0.0
        %819 = vmatpush1.msra.mxu0 0.0
        %820 = vmatprep.subr.mxu0 0.0
        %821 = vmatpush1.msra.mxu0 0.0
        %822 = vmatprep.subr.mxu0 0.0
        %823 = vmatpush1.msra.mxu0 0.0
        %824 = vmatprep.subr.mxu0 0.0
        %825 = vmatpush1.msra.mxu0 0.0
        %826 = vmatprep.subr.mxu0 0.0
        %827 = vmatpush1.msra.mxu0 0.0
        %828 = vmatprep.subr.mxu0 0.0
        %829 = vmatpush1.msra.mxu0 0.0
        %830 = vmatprep.subr.mxu0 0.0
        %831 = vmatpush1.msra.mxu0 0.0
        %832 = vmatprep.subr.mxu0 0.0
        %833 = vmatpush1.msra.mxu0 0.0
        %834 = vmatprep.subr.mxu0 0.0
        %835 = vmatpush1.msra.mxu0 0.0
        %836 = vmatprep.subr.mxu0 0.0
        %837 = vmatpush1.msra.mxu0 0.0
        %838 = vmatprep.subr.mxu0 0.0
        %839 = vmatpush1.msra.mxu0 0.0
        %840 = vmatprep.subr.mxu0 0.0
        %841 = vmatpush1.msra.mxu0 0.0
        %842 = vmatprep.subr.mxu0 0.0
        %843 = vmatpush1.msra.mxu0 0.0
        %844 = vmatprep.subr.mxu0 0.0
        %845 = vmatpush1.msra.mxu0 0.0
        %846 = vmatprep.subr.mxu0 0.0
        %847 = vmatpush1.msra.mxu0 0.0
        %848 = vmatprep.subr.mxu0 0.0
        %849 = vmatpush1.msra.mxu0 0.0
        %850 = vmatprep.subr.mxu0 0.0
        %851 = vmatpush1.msra.mxu0 0.0
        %852 = vmatprep.subr.mxu0 0.0
        %853 = vmatpush1.msra.mxu0 0.0
        %854 = vmatprep.subr.mxu0 0.0
        %855 = vmatpush1.msra.mxu0 0.0
        %856 = vmatprep.subr.mxu0 0.0
        %857 = vmatpush1.msra.mxu0 0.0
        %858 = vmatprep.subr.mxu0 0.0
        %859 = vmatpush1.msra.mxu0 0.0
        %860 = vmatprep.subr.mxu0 0.0
        %861 = vmatpush1.msra.mxu0 0.0
        %862 = vmatprep.subr.mxu0 0.0
        %863 = vmatpush1.msra.mxu0 0.0
        %864 = vmatprep.subr.mxu0 0.0
        %865 = vmatpush1.msra.mxu0 0.0
        %866 = vmatprep.mubr.f32.mxu0 0.0
        %867 = vmatmul.mubr.f32.gmra.mrb[0].mxu0 %v800
        %v868 = vpop.f32.mrb[0].mxu0
        %v869 = vadd.f32 0.0, %v868
        %v870 = vpop.f32.mrb[0].mxu0
        %871 = vdwg.mxu0
        %v872 = vld [vmem:[#allocation2 + $0x10] sm:$0xff]
        %v873 = vld [vmem:[#allocation2 + $0x18] sm:$0xff]
        %v875 = vsel %vm541, %v869, 0
        %877 = vmatprep.subr.mxu0 0.0
        %878 = vmatpush1.msra.mxu0 %v872
        %879 = vmatprep.subr.mxu0 0.0
        %880 = vmatpush1.msra.mxu0 %v873
        %881 = vmatprep.subr.mxu0 0.0
        %882 = vmatpush1.msra.mxu0 0.0
        %883 = vmatprep.subr.mxu0 0.0
        %884 = vmatpush1.msra.mxu0 0.0
        %885 = vmatprep.subr.mxu0 0.0
        %886 = vmatpush1.msra.mxu0 0.0
        %887 = vmatprep.subr.mxu0 0.0
        %888 = vmatpush1.msra.mxu0 0.0
        %889 = vmatprep.subr.mxu0 0.0
        %890 = vmatpush1.msra.mxu0 0.0
        %891 = vmatprep.subr.mxu0 0.0
        %892 = vmatpush1.msra.mxu0 0.0
        %893 = vmatprep.subr.mxu0 0.0
        %894 = vmatpush1.msra.mxu0 0.0
        %895 = vmatprep.subr.mxu0 0.0
        %896 = vmatpush1.msra.mxu0 0.0
        %897 = vmatprep.subr.mxu0 0.0
        %898 = vmatpush1.msra.mxu0 0.0
        %899 = vmatprep.subr.mxu0 0.0
        %900 = vmatpush1.msra.mxu0 0.0
        %901 = vmatprep.subr.mxu0 0.0
        %902 = vmatpush1.msra.mxu0 0.0
        %903 = vmatprep.subr.mxu0 0.0
        %904 = vmatpush1.msra.mxu0 0.0
        %905 = vmatprep.subr.mxu0 0.0
        %906 = vmatpush1.msra.mxu0 0.0
        %907 = vmatprep.subr.mxu0 0.0
        %908 = vmatpush1.msra.mxu0 0.0
        %909 = vmatprep.subr.mxu0 0.0
        %910 = vmatpush1.msra.mxu0 0.0
        %911 = vmatprep.subr.mxu0 0.0
        %912 = vmatpush1.msra.mxu0 0.0
        %913 = vmatprep.subr.mxu0 0.0
        %914 = vmatpush1.msra.mxu0 0.0
        %915 = vmatprep.subr.mxu0 0.0
        %916 = vmatpush1.msra.mxu0 0.0
        %917 = vmatprep.subr.mxu0 0.0
        %918 = vmatpush1.msra.mxu0 0.0
        %919 = vmatprep.subr.mxu0 0.0
        %920 = vmatpush1.msra.mxu0 0.0
        %921 = vmatprep.subr.mxu0 0.0
        %922 = vmatpush1.msra.mxu0 0.0
        %923 = vmatprep.subr.mxu0 0.0
        %924 = vmatpush1.msra.mxu0 0.0
        %925 = vmatprep.subr.mxu0 0.0
        %926 = vmatpush1.msra.mxu0 0.0
        %927 = vmatprep.subr.mxu0 0.0
        %928 = vmatpush1.msra.mxu0 0.0
        %929 = vmatprep.subr.mxu0 0.0
        %930 = vmatpush1.msra.mxu0 0.0
        %931 = vmatprep.subr.mxu0 0.0
        %932 = vmatpush1.msra.mxu0 0.0
        %933 = vmatprep.subr.mxu0 0.0
        %934 = vmatpush1.msra.mxu0 0.0
        %935 = vmatprep.subr.mxu0 0.0
        %936 = vmatpush1.msra.mxu0 0.0
        %937 = vmatprep.subr.mxu0 0.0
        %938 = vmatpush1.msra.mxu0 0.0
        %939 = vmatprep.subr.mxu0 0.0
        %940 = vmatpush1.msra.mxu0 0.0
        %941 = vmatprep.mubr.f32.mxu0 0.0
        %942 = vmatmul.mubr.f32.gmra.mrb[0].mxu0 %v875
        %v943 = vpop.f32.mrb[0].mxu0
        %v944 = vadd.f32 0.0, %v943
        %v945 = vpop.f32.mrb[0].mxu0
        %946 = vdwg.mxu0
        %v948 = vsel %vm541, %v702, 0
        %950 = vmatprep.subr.mxu0 0.0
        %951 = vmatpush1.msra.mxu0 %v705
        %952 = vmatprep.subr.mxu0 0.0
        %953 = vmatpush1.msra.mxu0 %v706
        %954 = vmatprep.subr.mxu0 0.0
        %955 = vmatpush1.msra.mxu0 0.0
        %956 = vmatprep.subr.mxu0 0.0
        %957 = vmatpush1.msra.mxu0 0.0
        %958 = vmatprep.subr.mxu0 0.0
        %959 = vmatpush1.msra.mxu0 0.0
        %960 = vmatprep.subr.mxu0 0.0
        %961 = vmatpush1.msra.mxu0 0.0
        %962 = vmatprep.subr.mxu0 0.0
        %963 = vmatpush1.msra.mxu0 0.0
        %964 = vmatprep.subr.mxu0 0.0
        %965 = vmatpush1.msra.mxu0 0.0
        %966 = vmatprep.subr.mxu0 0.0
        %967 = vmatpush1.msra.mxu0 0.0
        %968 = vmatprep.subr.mxu0 0.0
        %969 = vmatpush1.msra.mxu0 0.0
        %970 = vmatprep.subr.mxu0 0.0
        %971 = vmatpush1.msra.mxu0 0.0
        %972 = vmatprep.subr.mxu0 0.0
        %973 = vmatpush1.msra.mxu0 0.0
        %974 = vmatprep.subr.mxu0 0.0
        %975 = vmatpush1.msra.mxu0 0.0
        %976 = vmatprep.subr.mxu0 0.0
        %977 = vmatpush1.msra.mxu0 0.0
        %978 = vmatprep.subr.mxu0 0.0
        %979 = vmatpush1.msra.mxu0 0.0
        %980 = vmatprep.subr.mxu0 0.0
        %981 = vmatpush1.msra.mxu0 0.0
        %982 = vmatprep.subr.mxu0 0.0
        %983 = vmatpush1.msra.mxu0 0.0
        %984 = vmatprep.subr.mxu0 0.0
        %985 = vmatpush1.msra.mxu0 0.0
        %986 = vmatprep.subr.mxu0 0.0
        %987 = vmatpush1.msra.mxu0 0.0
        %988 = vmatprep.subr.mxu0 0.0
        %989 = vmatpush1.msra.mxu0 0.0
        %990 = vmatprep.subr.mxu0 0.0
        %991 = vmatpush1.msra.mxu0 0.0
        %992 = vmatprep.subr.mxu0 0.0
        %993 = vmatpush1.msra.mxu0 0.0
        %994 = vmatprep.subr.mxu0 0.0
        %995 = vmatpush1.msra.mxu0 0.0
        %996 = vmatprep.subr.mxu0 0.0
        %997 = vmatpush1.msra.mxu0 0.0
        %998 = vmatprep.subr.mxu0 0.0
        %999 = vmatpush1.msra.mxu0 0.0
        %1000 = vmatprep.subr.mxu0 0.0
        %1001 = vmatpush1.msra.mxu0 0.0
        %1002 = vmatprep.subr.mxu0 0.0
        %1003 = vmatpush1.msra.mxu0 0.0
        %1004 = vmatprep.subr.mxu0 0.0
        %1005 = vmatpush1.msra.mxu0 0.0
        %1006 = vmatprep.subr.mxu0 0.0
        %1007 = vmatpush1.msra.mxu0 0.0
        %1008 = vmatprep.subr.mxu0 0.0
        %1009 = vmatpush1.msra.mxu0 0.0
        %1010 = vmatprep.subr.mxu0 0.0
        %1011 = vmatpush1.msra.mxu0 0.0
        %1012 = vmatprep.subr.mxu0 0.0
        %1013 = vmatpush1.msra.mxu0 0.0
        %1014 = vmatprep.mubr.f32.mxu0 0.0
        %1015 = vmatmul.mubr.f32.gmra.mrb[0].mxu0 %v948
        %v1016 = vpop.f32.mrb[0].mxu0
        %v1017 = vadd.f32 %v944, %v1016
        %v1018 = vpop.f32.mrb[0].mxu0
        %1019 = vdwg.mxu0
        %v1020 = vld [vmem:[%s8] sm:$0x1]
        %v1022 = vlaneseq
        %v1023 = vshrl.u32 %v1022, 7
        %v1024 = vsub.s32 0, %v1023
        %v1025 = vrot.slane %v1020, %v1024
        %v1027 = vadd.f32 %v1017, %v1025
        %v1028 = vadd.f32 %v1027, %v444
        %v1029 = vld [vmem:[%s4 + $0x2] sm:$0x1]
        %v1030 = vld [vmem:[%s4 + $0x3] sm:$0x1]
        %v1031 = vsel %vm420, %v1028, 0.0
        %1032 = vadd.xlane.f32.xlu0 %v1031
        %v1033 = vpop.xlane.xlu0 %1032
        %v1034 = vmul.f32 %v1033, %v424
        %v1035 = vsub.f32 %v1028, %v1034
        %v1036 = vmul.f32 %v1035, %v1035
        %v1037 = vsel %vm420, %v1036, 0.0
        %1038 = vadd.xlane.f32.xlu0 %v1037
        %v1039 = vpop.xlane.xlu0 %1038
        %v1040 = vmul.f32 %v1039, %v424
        %v1041 = vadd.f32 %v1040, 1e-05
        %v1042 = vrsqrt.pop %v1041
        %v1043 = vmul.f32 %v1035, %v1042
        %v1044 = vlaneseq
        %v1045 = vshrl.u32 %v1044, 7
        %v1046 = vsub.s32 0, %v1045
        %v1047 = vrot.slane %v1029, %v1046
        %v1048 = vmul.f32 %v1043, %v1047
        %v1049 = vlaneseq
        %v1050 = vshrl.u32 %v1049, 7
        %v1051 = vsub.s32 0, %v1050
        %v1052 = vrot.slane %v1030, %v1051
        %v1053 = vadd.f32 %v1048, %v1052
        %v1054 = vld [vmem:[#allocation5] sm:$0x1]
        %v1056 = vlaneseq
        %v1057 = vshrl.u32 %v1056, 7
        %v1058 = vsub.s32 0, %v1057
        %v1059 = vrot.slane %v1054, %v1058
        %v1061 = vmul.f32 %v1053, %v1059
        %v1062 = vsel %vm420, %v1061, 0.0
        %1063 = vadd.xlane.f32.xlu0 %v1062
        %v1064 = vpop.xlane.xlu0 %1063
        %v1065 = vmul.f32 %v1064, %v415
        %v1066 = vsub.f32 1.0, %v415
        %v1067 = vmul.f32 %v1066, -1e+10
        %v1068 = vadd.f32 %v1065, %v1067
        %vm1069 = vcmask 7168
        %v1070 = vsel %vm1069, %v1068, -inf
        %v1071 = vrot.slane %v1070, 4
        %v1072 = vmax.f32 %v1070, %v1071
        %v1073 = vrot.slane %v1072, 2
        %v1074 = vmax.f32 %v1072, %v1073
        %v1075 = vrot.slane %v1074, 1
        %v1076 = vmax.f32 %v1074, %v1075
        %v1077 = vsub.f32 %v1068, %v1076
        %v1078 = vmul.f32 %v1077, 1.442695
        %v1079 = vpow.pop %v1078
        %v1080 = vsel %vm1069, %v1079, 0.0
        %v1081 = vrot.slane %v1080, 4
        %v1082 = vadd.f32 %v1080, %v1081
        %v1083 = vrot.slane %v1082, 2
        %v1084 = vadd.f32 %v1082, %v1083
        %v1085 = vrot.slane %v1084, 1
        %v1086 = vadd.f32 %v1084, %v1085
        %v1087 = vrcp.pop %v1086
        %v1088 = vmul.f32 %v1079, %v1087
        %1090 = vset.pattern.permute.xlu0 0
        %1091 = vperm.xlu0 %1090, %v1088
        %v1092 = vpop.permute.xlu0 %1091
        %v1094 = vmul.f32 %v1092, %v1053
        %v1095 = vsel %vm420, %v1094, 0.0
        %v1096 = vrot.slane %v1095, 4
        %v1097 = vadd.f32 %v1095, %v1096
        %v1098 = vrot.slane %v1097, 2
        %v1099 = vadd.f32 %v1097, %v1098
        %v1100 = vrot.slane %v1099, 1
        %v1101 = vadd.f32 %v1099, %v1100
        %vm1102 = vcmask 253952
        %1103 = vst.msk [vmem:[%s401] sm:$0x1] %vm1102, %v1101
        %s1104 = sand.u32 %s259, 1
        %s1105 = scalar_lea.sflag [#allocation4], %s1104
        %s1106 = sand.u32 %s259, 1
        %s1107 = scalar_lea.vmem [#allocation7], %s1106
        // Predicated region
        $region69: #{text_encoder_forward.1} parent=59 // pred_check
          %p1108 = pneg %p269
        $region70: #{text_encoder_forward.1} parent=59 // pred_check_branch
          %1110 = sbr.rel (%p1108) target = $region72
        $region71: #{text_encoder_forward.1} parent=59 // pred_region
          %s1112 = ssub.s32 16, 16
          %1113 = vsyncadd %s1105, %s1112
          %s1114 = smul.addr %s26, 16
          %s1115 = scalar_lea.hbm %s10, %s1114
          %s1117 = sshll.u32 %s1107, 4
          %s1118 = int_to_ptr.vmem [resolvable:$true] %s1117
          %1120 = dma.vmem_to_hbm [thread:$0]  %s1118, 16, %s1115, %s1105
        $region72: #{text_encoder_forward.1} parent=59 // pred_fallthru
          _
      $region60: #{text_encoder_forward.1} parent=5 // pred_fallthru
        _
      %p1121 = scmp.le.s32.totalorder 2, %s21
      // Predicated region
      $region73: #{text_encoder_forward.1} parent=5 // pred_check
        %p1122 = pneg %p1121
      $region74: #{text_encoder_forward.1} parent=5 // pred_check_branch
        %1124 = sbr.rel (%p1122) target = $region76
      $region75: #{text_encoder_forward.1} parent=5 // pred_region
        %s1125 = ssub.s32 %s21, 2
        // Predicated region
        $region77: #{text_encoder_forward.1} parent=75 // pred_check
          %p1126 = pneg %p275
        $region78: #{text_encoder_forward.1} parent=75 // pred_check_branch
          %1128 = sbr.rel (%p1126) target = $region80
        $region79: #{text_encoder_forward.1} parent=75 // pred_region
          %s1129 = sand.u32 %s260, 1
          %s1130 = scalar_lea.sflag [#allocation4], %s1129
          %s1131 = sand.u32 %s260, 1
          %s1132 = scalar_lea.vmem [#allocation7], %s1131
          %1133 = dma.done %s1130, 16
        $region80: #{text_encoder_forward.1} parent=75 // pred_fallthru
          _
      $region76: #{text_encoder_forward.1} parent=5 // pred_fallthru
        _
    $region6: #{text_encoder_forward.1} parent=1 // loop_footer
      %s25 = sadd.s32 1, %s21
    $region7: #{text_encoder_forward.1} parent=1 // loop_footer_branch
      %20 = sbr.rel target = $region3
    $region8: #{text_encoder_forward.1} parent=1 // loop_exit
      _
    %1134 = vsyncpa [#allocation3], 1
    %s1135 = scalar_lea.sflag [#allocation3], 1
    %1136 = vsyncpa %s1135, 1
    %1137 = vsyncpa [#allocation6], 1
    %1138 = vsyncpa [#allocation4], 1
    %s1139 = scalar_lea.sflag [#allocation4], 1
    %1140 = vsyncpa %s1139, 1

</llo_original>
